<compile_context>
chip_gen: v6e
topology: v6e:2x2x1
jax: 0.10.0
libtpu: 0.0.40
codegen_flags: <defaults>
</compile_context>

<pallas_src>
import jax
import jax.numpy as jnp
import numpy as np
from jax.experimental import pallas as pl
from jax.experimental.pallas import tpu as pltpu


def make_attention_kernel(heads, dim_head, dim, seq_len, batch_tile):
    inner = heads * dim_head
    scale = dim_head ** (-0.5)
    Bt, N, D = batch_tile, seq_len, dim

    def kernel(x_ref, wqkv_ref, wout_ref, bout_ref, o_ref):
        cdtype = x_ref.dtype  # native compute dtype fed to the MXU

        # ---- qkv projection: flatten (Bt, N) rows so the MXU M-dim is Bt*N.
        x2d = x_ref[...].reshape(Bt * N, D)                       # native dtype
        qkv = jnp.dot(x2d, wqkv_ref[...],
                      preferred_element_type=jnp.float32)         # (Bt*N, 3*inner) f32
        qkv = qkv.reshape(Bt, N, 3 * inner)

        # Fold the softmax scale into q (cheaper than scaling the NxN scores).
        q = (qkv[:, :, 0 * inner:1 * inner] * scale).astype(cdtype)   # (Bt, N, inner)
        k = qkv[:, :, 1 * inner:2 * inner].astype(cdtype)
        v = qkv[:, :, 2 * inner:3 * inner].astype(cdtype)

        # ---- per-head attention; each head's output is projected through its
        # slice of w_out and accumulated into one lane-dense (Bt*N, D) buffer.
        acc = jnp.zeros((Bt * N, D), jnp.float32)
        for h in range(heads):
            sl = slice(h * dim_head, (h + 1) * dim_head)
            qh = q[:, :, sl]                                       # (Bt, N, dh)
            kh = k[:, :, sl]
            vh = v[:, :, sl]

            dots = jnp.einsum("bqd,bkd->bqk", qh, kh,
                              preferred_element_type=jnp.float32)  # (Bt, N, N) f32
            dots = dots - jnp.max(dots, axis=-1, keepdims=True)
            e = jnp.exp(dots)
            attn = e * pl.reciprocal(jnp.sum(e, axis=-1, keepdims=True),
                                     approx=True)

            oh = jnp.einsum("bqk,bkd->bqd", attn.astype(cdtype), vh,
                            preferred_element_type=jnp.float32)    # (Bt, N, dh) f32

            w_h = wout_ref[h * dim_head:(h + 1) * dim_head, :]     # (dh, D)
            acc = acc + jnp.dot(oh.reshape(Bt * N, dim_head).astype(cdtype), w_h,
                                preferred_element_type=jnp.float32)

        # Output bias (dropout p=0 is identity), single lane-dense store on D.
        y = acc + bout_ref[...].astype(jnp.float32)                # (Bt*N, D)
        o_ref[...] = y.reshape(Bt, N, D).astype(o_ref.dtype)

    return kernel


def attention_pallas(x, w_qkv, w_out, b_out, heads, dim_head):
    B, N, D = x.shape
    inner = heads * dim_head

    # Pick the largest divisor of B such that Bt*N fills the sublane dim (~128
    # rows) -- amortizes per-grid-step overhead and fills the MXU M dimension.
    target_rows = 128
    bt = 1
    for d in range(1, B + 1):
        if B % d == 0 and d * N <= max(target_rows, N):
            bt = d

    kernel = make_attention_kernel(heads, dim_head, D, N, bt)

    return pl.pallas_call(
        kernel,
        out_shape=jax.ShapeDtypeStruct((B, N, D), x.dtype),
        grid_spec=pltpu.PrefetchScalarGridSpec(
            num_scalar_prefetch=0,
            grid=(B // bt,),
            in_specs=[
                pl.BlockSpec((bt, N, D), lambda b: (b, 0, 0)),
                pl.BlockSpec((D, 3 * inner), lambda b: (0, 0)),
                pl.BlockSpec((inner, D), lambda b: (0, 0)),
                pl.BlockSpec((1, D), lambda b: (0, 0)),
            ],
            out_specs=pl.BlockSpec((bt, N, D), lambda b: (b, 0, 0)),
        ),
        compiler_params=pltpu.CompilerParams(
            dimension_semantics=("parallel",)),
    )(x, w_qkv, w_out, b_out)


def attention_ref(x, w_qkv, w_out, b_out, heads, dim_head):
    """Pure-JAX reference mirroring the PyTorch forward."""
    B, N, D = x.shape
    inner = heads * dim_head
    scale = dim_head ** (-0.5)
    qkv = jnp.einsum("bnd,de->bne", x, w_qkv)
    q, k, v = jnp.split(qkv, 3, axis=-1)

    def to_heads(t):
        return t.reshape(B, N, heads, dim_head).transpose(0, 2, 1, 3)

    q, k, v = map(to_heads, (q, k, v))
    dots = jnp.einsum("bhnd,bhmd->bhnm", q, k) * scale
    attn = jax.nn.softmax(dots, axis=-1)
    out = jnp.einsum("bhnm,bhmd->bhnd", attn, v)
    out = out.transpose(0, 2, 1, 3).reshape(B, N, inner)
    return jnp.einsum("bne,ed->bnd", out, w_out) + b_out[0]


if __name__ == "__main__":
    # Small shapes consistent with the module:
    B, N, D = 2, 8, 32          # batch, tokens, embedding dim
    heads, dim_head = 4, 16     # inner_dim = 64, project_out = True
    inner = heads * dim_head

    key = jax.random.PRNGKey(0)
    k1, k2, k3, k4 = jax.random.split(key, 4)
    x = jax.random.normal(k1, (B, N, D), dtype=jnp.float32)
    w_qkv = jax.random.normal(k2, (D, 3 * inner), dtype=jnp.float32) * 0.02
    w_out = jax.random.normal(k3, (inner, D), dtype=jnp.float32) * 0.02
    b_out = jax.random.normal(k4, (1, D), dtype=jnp.float32) * 0.02

    y = attention_pallas(x, w_qkv, w_out, b_out, heads, dim_head)
    y = jax.block_until_ready(y)

    y_ref = attention_ref(x, w_qkv, w_out, b_out, heads, dim_head)
    # approx reciprocal in the softmax denominator => slightly looser tolerance.
    np.testing.assert_allclose(np.asarray(y), np.asarray(y_ref),
                               rtol=5e-3, atol=1e-3)

    print("KERNEL_OK")
</pallas_src>

<mosaic_0001>
module attributes {stable_mosaic.version = 11 : i64} {
  func.func @kernel(%arg0: i32, %arg1: memref<2x8x32xf32, #tpu.memory_space<vmem>>, %arg2: memref<32x192xf32, #tpu.memory_space<vmem>>, %arg3: memref<64x32xf32, #tpu.memory_space<vmem>>, %arg4: memref<1x32xf32, #tpu.memory_space<vmem>>, %arg5: memref<2x8x32xf32, #tpu.memory_space<vmem>>) attributes {dimension_semantics = [#tpu.dimension_semantics<parallel>], iteration_bounds = array<i64: 1>, scalar_prefetch = 0 : i64, scratch_operands = 0 : i64, tpu.core_type = #tpu.core_type<tc>, window_params = [{transform_indices = @transform_0, window_bounds = array<i64: 2, 8, 32>}, {pipeline_mode = #tpu.pipeline_mode<synchronous>, transform_indices = @transform_1, window_bounds = array<i64: 32, 192>}, {pipeline_mode = #tpu.pipeline_mode<synchronous>, transform_indices = @transform_2, window_bounds = array<i64: 64, 32>}, {pipeline_mode = #tpu.pipeline_mode<synchronous>, transform_indices = @transform_3, window_bounds = array<i64: 1, 32>}, {transform_indices = @transform_4, window_bounds = array<i64: 2, 8, 32>}]} {
    %c0 = arith.constant 0 : index
    %c0_0 = arith.constant 0 : index
    %c0_1 = arith.constant 0 : index
    %0 = vector.load %arg1[%c0, %c0_0, %c0_1] : memref<2x8x32xf32, #tpu.memory_space<vmem>>, vector<2x8x32xf32>
    %1 = vector.shape_cast %0 : vector<2x8x32xf32> to vector<16x32xf32>
    %c0_2 = arith.constant 0 : index
    %c0_3 = arith.constant 0 : index
    %2 = vector.load %arg2[%c0_2, %c0_3] : memref<32x192xf32, #tpu.memory_space<vmem>>, vector<32x192xf32>
    %cst = arith.constant dense<0.000000e+00> : vector<16x192xf32>
    %3 = tpu.matmul %1, %2, %cst {dimension_numbers = #tpu.dot_dimension_numbers<[1], [0], [0], [1], [0, 0, 1, 1], [], []>} : vector<16x32xf32>, vector<32x192xf32>, vector<16x192xf32> -> vector<16x192xf32>
    %4 = vector.shape_cast %3 : vector<16x192xf32> to vector<2x8x192xf32>
    %5 = vector.extract_strided_slice %4 {offsets = [0, 0, 0], sizes = [2, 8, 64], strides = [1, 1, 1]} : vector<2x8x192xf32> to vector<2x8x64xf32>
    %cst_4 = arith.constant 2.500000e-01 : f32
    %6 = vector.broadcast %cst_4 : f32 to vector<2x8x64xf32>
    %7 = arith.mulf %5, %6 : vector<2x8x64xf32>
    %8 = vector.extract_strided_slice %4 {offsets = [0, 0, 64], sizes = [2, 8, 64], strides = [1, 1, 1]} : vector<2x8x192xf32> to vector<2x8x64xf32>
    %9 = vector.extract_strided_slice %4 {offsets = [0, 0, 128], sizes = [2, 8, 64], strides = [1, 1, 1]} : vector<2x8x192xf32> to vector<2x8x64xf32>
    %cst_5 = arith.constant 0.000000e+00 : f32
    %10 = vector.broadcast %cst_5 : f32 to vector<16x32xf32>
    %11 = vector.extract_strided_slice %7 {offsets = [0, 0, 0], sizes = [2, 8, 16], strides = [1, 1, 1]} : vector<2x8x64xf32> to vector<2x8x16xf32>
    %12 = vector.extract_strided_slice %8 {offsets = [0, 0, 0], sizes = [2, 8, 16], strides = [1, 1, 1]} : vector<2x8x64xf32> to vector<2x8x16xf32>
    %13 = vector.extract_strided_slice %9 {offsets = [0, 0, 0], sizes = [2, 8, 16], strides = [1, 1, 1]} : vector<2x8x64xf32> to vector<2x8x16xf32>
    "tpu.trace_start"() <{level = 10 : i32, message = "bqd,bkd->bqk"}> : () -> ()
    %cst_6 = arith.constant dense<0.000000e+00> : vector<2x8x8xf32>
    %14 = tpu.matmul %11, %12, %cst_6 {dimension_numbers = #tpu.dot_dimension_numbers<[2], [2], [1], [1], [0, 0, 0, 1, 1, 1], [0], [0]>} : vector<2x8x16xf32>, vector<2x8x16xf32>, vector<2x8x8xf32> -> vector<2x8x8xf32>
    "tpu.trace_stop"() : () -> ()
    %cst_7 = arith.constant dense<0xFF800000> : vector<2x8xf32>
    %15 = vector.multi_reduction <maximumf>, %14, %cst_7 [2] : vector<2x8x8xf32> to vector<2x8xf32>
    %16 = vector.shape_cast %15 : vector<2x8xf32> to vector<2x8x1xf32>
    %17 = vector.broadcast %16 : vector<2x8x1xf32> to vector<2x8x8xf32>
    %18 = arith.subf %14, %17 : vector<2x8x8xf32>
    %19 = math.exp %18 : vector<2x8x8xf32>
    %cst_8 = arith.constant dense<0.000000e+00> : vector<2x8xf32>
    %20 = vector.multi_reduction <add>, %19, %cst_8 [2] : vector<2x8x8xf32> to vector<2x8xf32>
    %21 = vector.shape_cast %20 : vector<2x8xf32> to vector<2x8x1xf32>
    %22 = tpu.reciprocal %21 {approx = true} : vector<2x8x1xf32> -> vector<2x8x1xf32>
    %23 = vector.broadcast %22 : vector<2x8x1xf32> to vector<2x8x8xf32>
    %24 = arith.mulf %19, %23 : vector<2x8x8xf32>
    "tpu.trace_start"() <{level = 10 : i32, message = "bqk,bkd->bqd"}> : () -> ()
    %cst_9 = arith.constant dense<0.000000e+00> : vector<2x8x16xf32>
    %25 = tpu.matmul %24, %13, %cst_9 {dimension_numbers = #tpu.dot_dimension_numbers<[2], [1], [1], [2], [0, 0, 0, 1, 1, 2], [0], [0]>} : vector<2x8x8xf32>, vector<2x8x16xf32>, vector<2x8x16xf32> -> vector<2x8x16xf32>
    "tpu.trace_stop"() : () -> ()
    %c0_10 = arith.constant 0 : index
    %c0_11 = arith.constant 0 : index
    %26 = vector.load %arg3[%c0_10, %c0_11] : memref<64x32xf32, #tpu.memory_space<vmem>>, vector<16x32xf32>
    %27 = vector.shape_cast %25 : vector<2x8x16xf32> to vector<16x16xf32>
    %cst_12 = arith.constant dense<0.000000e+00> : vector<16x32xf32>
    %28 = tpu.matmul %27, %26, %cst_12 {dimension_numbers = #tpu.dot_dimension_numbers<[1], [0], [0], [1], [0, 0, 1, 1], [], []>} : vector<16x16xf32>, vector<16x32xf32>, vector<16x32xf32> -> vector<16x32xf32>
    %29 = arith.addf %10, %28 : vector<16x32xf32>
    %30 = vector.extract_strided_slice %7 {offsets = [0, 0, 16], sizes = [2, 8, 16], strides = [1, 1, 1]} : vector<2x8x64xf32> to vector<2x8x16xf32>
    %31 = vector.extract_strided_slice %8 {offsets = [0, 0, 16], sizes = [2, 8, 16], strides = [1, 1, 1]} : vector<2x8x64xf32> to vector<2x8x16xf32>
    %32 = vector.extract_strided_slice %9 {offsets = [0, 0, 16], sizes = [2, 8, 16], strides = [1, 1, 1]} : vector<2x8x64xf32> to vector<2x8x16xf32>
    "tpu.trace_start"() <{level = 10 : i32, message = "bqd,bkd->bqk"}> : () -> ()
    %cst_13 = arith.constant dense<0.000000e+00> : vector<2x8x8xf32>
    %33 = tpu.matmul %30, %31, %cst_13 {dimension_numbers = #tpu.dot_dimension_numbers<[2], [2], [1], [1], [0, 0, 0, 1, 1, 1], [0], [0]>} : vector<2x8x16xf32>, vector<2x8x16xf32>, vector<2x8x8xf32> -> vector<2x8x8xf32>
    "tpu.trace_stop"() : () -> ()
    %cst_14 = arith.constant dense<0xFF800000> : vector<2x8xf32>
    %34 = vector.multi_reduction <maximumf>, %33, %cst_14 [2] : vector<2x8x8xf32> to vector<2x8xf32>
    %35 = vector.shape_cast %34 : vector<2x8xf32> to vector<2x8x1xf32>
    %36 = vector.broadcast %35 : vector<2x8x1xf32> to vector<2x8x8xf32>
    %37 = arith.subf %33, %36 : vector<2x8x8xf32>
    %38 = math.exp %37 : vector<2x8x8xf32>
    %cst_15 = arith.constant dense<0.000000e+00> : vector<2x8xf32>
    %39 = vector.multi_reduction <add>, %38, %cst_15 [2] : vector<2x8x8xf32> to vector<2x8xf32>
    %40 = vector.shape_cast %39 : vector<2x8xf32> to vector<2x8x1xf32>
    %41 = tpu.reciprocal %40 {approx = true} : vector<2x8x1xf32> -> vector<2x8x1xf32>
    %42 = vector.broadcast %41 : vector<2x8x1xf32> to vector<2x8x8xf32>
    %43 = arith.mulf %38, %42 : vector<2x8x8xf32>
    "tpu.trace_start"() <{level = 10 : i32, message = "bqk,bkd->bqd"}> : () -> ()
    %cst_16 = arith.constant dense<0.000000e+00> : vector<2x8x16xf32>
    %44 = tpu.matmul %43, %32, %cst_16 {dimension_numbers = #tpu.dot_dimension_numbers<[2], [1], [1], [2], [0, 0, 0, 1, 1, 2], [0], [0]>} : vector<2x8x8xf32>, vector<2x8x16xf32>, vector<2x8x16xf32> -> vector<2x8x16xf32>
    "tpu.trace_stop"() : () -> ()
    %c16 = arith.constant 16 : index
    %c0_17 = arith.constant 0 : index
    %45 = vector.load %arg3[%c16, %c0_17] : memref<64x32xf32, #tpu.memory_space<vmem>>, vector<16x32xf32>
    %46 = vector.shape_cast %44 : vector<2x8x16xf32> to vector<16x16xf32>
    %cst_18 = arith.constant dense<0.000000e+00> : vector<16x32xf32>
    %47 = tpu.matmul %46, %45, %cst_18 {dimension_numbers = #tpu.dot_dimension_numbers<[1], [0], [0], [1], [0, 0, 1, 1], [], []>} : vector<16x16xf32>, vector<16x32xf32>, vector<16x32xf32> -> vector<16x32xf32>
    %48 = arith.addf %29, %47 : vector<16x32xf32>
    %49 = vector.extract_strided_slice %7 {offsets = [0, 0, 32], sizes = [2, 8, 16], strides = [1, 1, 1]} : vector<2x8x64xf32> to vector<2x8x16xf32>
    %50 = vector.extract_strided_slice %8 {offsets = [0, 0, 32], sizes = [2, 8, 16], strides = [1, 1, 1]} : vector<2x8x64xf32> to vector<2x8x16xf32>
    %51 = vector.extract_strided_slice %9 {offsets = [0, 0, 32], sizes = [2, 8, 16], strides = [1, 1, 1]} : vector<2x8x64xf32> to vector<2x8x16xf32>
    "tpu.trace_start"() <{level = 10 : i32, message = "bqd,bkd->bqk"}> : () -> ()
    %cst_19 = arith.constant dense<0.000000e+00> : vector<2x8x8xf32>
    %52 = tpu.matmul %49, %50, %cst_19 {dimension_numbers = #tpu.dot_dimension_numbers<[2], [2], [1], [1], [0, 0, 0, 1, 1, 1], [0], [0]>} : vector<2x8x16xf32>, vector<2x8x16xf32>, vector<2x8x8xf32> -> vector<2x8x8xf32>
    "tpu.trace_stop"() : () -> ()
    %cst_20 = arith.constant dense<0xFF800000> : vector<2x8xf32>
    %53 = vector.multi_reduction <maximumf>, %52, %cst_20 [2] : vector<2x8x8xf32> to vector<2x8xf32>
    %54 = vector.shape_cast %53 : vector<2x8xf32> to vector<2x8x1xf32>
    %55 = vector.broadcast %54 : vector<2x8x1xf32> to vector<2x8x8xf32>
    %56 = arith.subf %52, %55 : vector<2x8x8xf32>
    %57 = math.exp %56 : vector<2x8x8xf32>
    %cst_21 = arith.constant dense<0.000000e+00> : vector<2x8xf32>
    %58 = vector.multi_reduction <add>, %57, %cst_21 [2] : vector<2x8x8xf32> to vector<2x8xf32>
    %59 = vector.shape_cast %58 : vector<2x8xf32> to vector<2x8x1xf32>
    %60 = tpu.reciprocal %59 {approx = true} : vector<2x8x1xf32> -> vector<2x8x1xf32>
    %61 = vector.broadcast %60 : vector<2x8x1xf32> to vector<2x8x8xf32>
    %62 = arith.mulf %57, %61 : vector<2x8x8xf32>
    "tpu.trace_start"() <{level = 10 : i32, message = "bqk,bkd->bqd"}> : () -> ()
    %cst_22 = arith.constant dense<0.000000e+00> : vector<2x8x16xf32>
    %63 = tpu.matmul %62, %51, %cst_22 {dimension_numbers = #tpu.dot_dimension_numbers<[2], [1], [1], [2], [0, 0, 0, 1, 1, 2], [0], [0]>} : vector<2x8x8xf32>, vector<2x8x16xf32>, vector<2x8x16xf32> -> vector<2x8x16xf32>
    "tpu.trace_stop"() : () -> ()
    %c32 = arith.constant 32 : index
    %c0_23 = arith.constant 0 : index
    %64 = vector.load %arg3[%c32, %c0_23] : memref<64x32xf32, #tpu.memory_space<vmem>>, vector<16x32xf32>
    %65 = vector.shape_cast %63 : vector<2x8x16xf32> to vector<16x16xf32>
    %cst_24 = arith.constant dense<0.000000e+00> : vector<16x32xf32>
    %66 = tpu.matmul %65, %64, %cst_24 {dimension_numbers = #tpu.dot_dimension_numbers<[1], [0], [0], [1], [0, 0, 1, 1], [], []>} : vector<16x16xf32>, vector<16x32xf32>, vector<16x32xf32> -> vector<16x32xf32>
    %67 = arith.addf %48, %66 : vector<16x32xf32>
    %68 = vector.extract_strided_slice %7 {offsets = [0, 0, 48], sizes = [2, 8, 16], strides = [1, 1, 1]} : vector<2x8x64xf32> to vector<2x8x16xf32>
    %69 = vector.extract_strided_slice %8 {offsets = [0, 0, 48], sizes = [2, 8, 16], strides = [1, 1, 1]} : vector<2x8x64xf32> to vector<2x8x16xf32>
    %70 = vector.extract_strided_slice %9 {offsets = [0, 0, 48], sizes = [2, 8, 16], strides = [1, 1, 1]} : vector<2x8x64xf32> to vector<2x8x16xf32>
    "tpu.trace_start"() <{level = 10 : i32, message = "bqd,bkd->bqk"}> : () -> ()
    %cst_25 = arith.constant dense<0.000000e+00> : vector<2x8x8xf32>
    %71 = tpu.matmul %68, %69, %cst_25 {dimension_numbers = #tpu.dot_dimension_numbers<[2], [2], [1], [1], [0, 0, 0, 1, 1, 1], [0], [0]>} : vector<2x8x16xf32>, vector<2x8x16xf32>, vector<2x8x8xf32> -> vector<2x8x8xf32>
    "tpu.trace_stop"() : () -> ()
    %cst_26 = arith.constant dense<0xFF800000> : vector<2x8xf32>
    %72 = vector.multi_reduction <maximumf>, %71, %cst_26 [2] : vector<2x8x8xf32> to vector<2x8xf32>
    %73 = vector.shape_cast %72 : vector<2x8xf32> to vector<2x8x1xf32>
    %74 = vector.broadcast %73 : vector<2x8x1xf32> to vector<2x8x8xf32>
    %75 = arith.subf %71, %74 : vector<2x8x8xf32>
    %76 = math.exp %75 : vector<2x8x8xf32>
    %cst_27 = arith.constant dense<0.000000e+00> : vector<2x8xf32>
    %77 = vector.multi_reduction <add>, %76, %cst_27 [2] : vector<2x8x8xf32> to vector<2x8xf32>
    %78 = vector.shape_cast %77 : vector<2x8xf32> to vector<2x8x1xf32>
    %79 = tpu.reciprocal %78 {approx = true} : vector<2x8x1xf32> -> vector<2x8x1xf32>
    %80 = vector.broadcast %79 : vector<2x8x1xf32> to vector<2x8x8xf32>
    %81 = arith.mulf %76, %80 : vector<2x8x8xf32>
    "tpu.trace_start"() <{level = 10 : i32, message = "bqk,bkd->bqd"}> : () -> ()
    %cst_28 = arith.constant dense<0.000000e+00> : vector<2x8x16xf32>
    %82 = tpu.matmul %81, %70, %cst_28 {dimension_numbers = #tpu.dot_dimension_numbers<[2], [1], [1], [2], [0, 0, 0, 1, 1, 2], [0], [0]>} : vector<2x8x8xf32>, vector<2x8x16xf32>, vector<2x8x16xf32> -> vector<2x8x16xf32>
    "tpu.trace_stop"() : () -> ()
    %c48 = arith.constant 48 : index
    %c0_29 = arith.constant 0 : index
    %83 = vector.load %arg3[%c48, %c0_29] : memref<64x32xf32, #tpu.memory_space<vmem>>, vector<16x32xf32>
    %84 = vector.shape_cast %82 : vector<2x8x16xf32> to vector<16x16xf32>
    %cst_30 = arith.constant dense<0.000000e+00> : vector<16x32xf32>
    %85 = tpu.matmul %84, %83, %cst_30 {dimension_numbers = #tpu.dot_dimension_numbers<[1], [0], [0], [1], [0, 0, 1, 1], [], []>} : vector<16x16xf32>, vector<16x32xf32>, vector<16x32xf32> -> vector<16x32xf32>
    %86 = arith.addf %67, %85 : vector<16x32xf32>
    %c0_31 = arith.constant 0 : index
    %c0_32 = arith.constant 0 : index
    %87 = vector.load %arg4[%c0_31, %c0_32] : memref<1x32xf32, #tpu.memory_space<vmem>>, vector<1x32xf32>
    %88 = vector.broadcast %87 : vector<1x32xf32> to vector<16x32xf32>
    %89 = arith.addf %86, %88 : vector<16x32xf32>
    %90 = vector.shape_cast %89 : vector<16x32xf32> to vector<2x8x32xf32>
    %c0_33 = arith.constant 0 : index
    %c0_34 = arith.constant 0 : index
    %c0_35 = arith.constant 0 : index
    %91 = vector.load %arg5[%c0_33, %c0_34, %c0_35] : memref<2x8x32xf32, #tpu.memory_space<vmem>>, vector<2x8x32xf32>
    tpu.vector_store %arg5[%c0_33, %c0_34, %c0_35], %90 {strides = array<i32>} : memref<2x8x32xf32, #tpu.memory_space<vmem>>, vector<2x8x32xf32>,
    return
  }
  func.func @transform_0(%arg0: i32) -> (i32, i32, i32) {
    %c0_i32 = arith.constant 0 : i32
    %c0_i32_0 = arith.constant 0 : i32
    %c0_i32_1 = arith.constant 0 : i32
    return %arg0, %c0_i32, %c0_i32_0 : i32, i32, i32
  }
  func.func @transform_1(%arg0: i32) -> (i32, i32) {
    %c0_i32 = arith.constant 0 : i32
    %c0_i32_0 = arith.constant 0 : i32
    %c0_i32_1 = arith.constant 0 : i32
    return %c0_i32, %c0_i32_0 : i32, i32
  }
  func.func @transform_2(%arg0: i32) -> (i32, i32) {
    %c0_i32 = arith.constant 0 : i32
    %c0_i32_0 = arith.constant 0 : i32
    %c0_i32_1 = arith.constant 0 : i32
    return %c0_i32, %c0_i32_0 : i32, i32
  }
  func.func @transform_3(%arg0: i32) -> (i32, i32) {
    %c0_i32 = arith.constant 0 : i32
    %c0_i32_0 = arith.constant 0 : i32
    %c0_i32_1 = arith.constant 0 : i32
    return %c0_i32, %c0_i32_0 : i32, i32
  }
  func.func @transform_4(%arg0: i32) -> (i32, i32, i32) {
    %c0_i32 = arith.constant 0 : i32
    %c0_i32_0 = arith.constant 0 : i32
    %c0_i32_1 = arith.constant 0 : i32
    return %arg0, %c0_i32, %c0_i32_0 : i32, i32, i32
  }
}

</mosaic_0001>

<llo_original>
// kernel: tpu_custom_call.1
$region0: #{tpu_custom_call.1}
  #allocation0 [shape = 'u32[]', space=smem, size = 0x4, offset = 0x4, fixed_abs, tag = 'smem constant byte address 0x4 - core index']
  #allocation1 [shape = 'u32[144,128]{1,0:T(1,128)}', space=vmem, size = 0x12000, scoped, tag = 'internal scratch']
  %s0 = inlined_call_operand.vmem [shape: f32[2,8,32], index: 0, kind: input, shape index: {}]
  %s1 = inlined_call_operand.vmem [shape: f32[32,192], index: 1, kind: input, shape index: {}]
  %s2 = inlined_call_operand.vmem [shape: f32[64,32], index: 2, kind: input, shape index: {}]
  %s3 = inlined_call_operand.vmem [shape: f32[1,32], index: 3, kind: input, shape index: {}]
  %s4 = inlined_call_operand.hbm [shape: f32[2,8,32], index: 4, kind: output, shape index: {}]
  %s5 = sld [smem:[#allocation0]]
  $region26: #{tpu_custom_call.1} parent=0
    _
  %s7 = ssub.s32 1, %s5
  %s8 = scalar_select 0, %s7, %s5
  $region1: #{tpu_custom_call.1} parent=0
    #allocation2 [shape = 'u8[8192]{0}', space=vmem, size = 0x2000, scoped, tag = 'output window, operand 0, single buffered']
    #allocation3 [shape = 's32[1]{0}', space=sflag, size = 0x4, scoped, tag = 'scoped memory for tpu_custom_call.1']
    %9 = vsyncpa [#allocation3], 0
    // Predicated region
    $region2: #{tpu_custom_call.1} parent=1 // pred_check
      _
    $region3: #{tpu_custom_call.1} parent=1 // pred_check_branch
      %11 = sbr.rel (0) target = $region5
    $region4: #{tpu_custom_call.1} parent=1 // pred_region
      _
    $region5: #{tpu_custom_call.1} parent=1 // pred_fallthru
      _
    // Predicated region
    $region6: #{tpu_custom_call.1} parent=1 // pred_check
      _
    $region7: #{tpu_custom_call.1} parent=1 // pred_check_branch
      %13 = sbr.rel (0) target = $region9
    $region8: #{tpu_custom_call.1} parent=1 // pred_region
      _
    $region9: #{tpu_custom_call.1} parent=1 // pred_fallthru
      _
    // Predicated region
    $region10: #{tpu_custom_call.1} parent=1 // pred_check
      _
    $region11: #{tpu_custom_call.1} parent=1 // pred_check_branch
      %15 = sbr.rel (0) target = $region13
    $region12: #{tpu_custom_call.1} parent=1 // pred_region
      _
    $region13: #{tpu_custom_call.1} parent=1 // pred_fallthru
      _
    // Predicated region
    $region14: #{tpu_custom_call.1} parent=1 // pred_check
      _
    $region15: #{tpu_custom_call.1} parent=1 // pred_check_branch
      %17 = sbr.rel (0) target = $region17
    $region16: #{tpu_custom_call.1} parent=1 // pred_region
      _
    $region17: #{tpu_custom_call.1} parent=1 // pred_fallthru
      _
    %v18 = vld [vmem:[%s0] sm:$0xff]
    %v19 = vld [vmem:[%s0 + $0x8] sm:$0xff]
    %v20 = vld [vmem:[%s1] sm:$0xff]
    %v21 = vld [vmem:[%s1 + $0x8] sm:$0xff]
    %v22 = vld [vmem:[%s1 + $0x10] sm:$0xff]
    %v23 = vld [vmem:[%s1 + $0x18] sm:$0xff]
    %v24 = vld [vmem:[%s1 + $0x20] sm:$0xff]
    %v25 = vld [vmem:[%s1 + $0x28] sm:$0xff]
    %v26 = vld [vmem:[%s1 + $0x30] sm:$0xff]
    %v27 = vld [vmem:[%s1 + $0x38] sm:$0xff]
    %vm28 = vcmask 261120
    %v30 = vsel %vm28, %v18, 0
    %v33 = vsel %vm28, %v19, 0
    %35 = vmatprep.subr.mxu0 0.0
    %36 = vmatpush1.msra.mxu0 0.0
    %37 = vmatprep.subr.mxu0 0.0
    %38 = vmatpush1.msra.mxu0 0.0
    %39 = vmatprep.subr.mxu0 0.0
    %40 = vmatpush1.msra.mxu0 0.0
    %41 = vmatprep.subr.mxu0 0.0
    %42 = vmatpush1.msra.mxu0 0.0
    %43 = vmatprep.subr.mxu0 0.0
    %44 = vmatpush1.msra.mxu0 0.0
    %45 = vmatprep.subr.mxu0 0.0
    %46 = vmatpush1.msra.mxu0 0.0
    %47 = vmatprep.subr.mxu0 0.0
    %48 = vmatpush1.msra.mxu0 0.0
    %49 = vmatprep.subr.mxu0 0.0
    %50 = vmatpush1.msra.mxu0 0.0
    %51 = vmatprep.subr.mxu0 0.0
    %52 = vmatpush1.msra.mxu0 0.0
    %53 = vmatprep.subr.mxu0 0.0
    %54 = vmatpush1.msra.mxu0 0.0
    %55 = vmatprep.subr.mxu0 0.0
    %56 = vmatpush1.msra.mxu0 0.0
    %57 = vmatprep.subr.mxu0 0.0
    %58 = vmatpush1.msra.mxu0 0.0
    %59 = vmatprep.subr.mxu0 %v27
    %60 = vmatpush1.msra.mxu0 %v26
    %61 = vmatprep.subr.mxu0 %v25
    %62 = vmatpush1.msra.mxu0 %v24
    %63 = vmatprep.subr.mxu0 %v23
    %64 = vmatpush1.msra.mxu0 %v22
    %65 = vmatprep.subr.mxu0 %v21
    %66 = vmatpush1.msra.mxu0 %v20
    %67 = vmatprep.subr.mxu0 0.0
    %68 = vmatpush2.msra.mxu0 0.0
    %69 = vmatprep.subr.mxu0 0.0
    %70 = vmatpush2.msra.mxu0 0.0
    %71 = vmatprep.subr.mxu0 0.0
    %72 = vmatpush2.msra.mxu0 0.0
    %73 = vmatprep.subr.mxu0 0.0
    %74 = vmatpush2.msra.mxu0 0.0
    %75 = vmatprep.subr.mxu0 0.0
    %76 = vmatpush2.msra.mxu0 0.0
    %77 = vmatprep.subr.mxu0 0.0
    %78 = vmatpush2.msra.mxu0 0.0
    %79 = vmatprep.subr.mxu0 0.0
    %80 = vmatpush2.msra.mxu0 0.0
    %81 = vmatprep.subr.mxu0 0.0
    %82 = vmatpush2.msra.mxu0 0.0
    %83 = vmatprep.subr.mxu0 0.0
    %84 = vmatpush2.msra.mxu0 0.0
    %85 = vmatprep.subr.mxu0 0.0
    %86 = vmatpush2.msra.mxu0 0.0
    %87 = vmatprep.subr.mxu0 0.0
    %88 = vmatpush2.msra.mxu0 0.0
    %89 = vmatprep.subr.mxu0 0.0
    %90 = vmatpush2.msra.mxu0 0.0
    %91 = vmatprep.subr.mxu0 0.0
    %92 = vmatpush2.msra.mxu0 0.0
    %93 = vmatprep.subr.mxu0 0.0
    %94 = vmatpush2.msra.mxu0 0.0
    %95 = vmatprep.subr.mxu0 0.0
    %96 = vmatpush2.msra.mxu0 0.0
    %97 = vmatprep.subr.mxu0 0.0
    %98 = vmatpush2.msra.mxu0 0.0
    %99 = vmatprep.mubr.f32.mxu0 0.0
    %100 = vmatmul.mubr.f32.gmra.mxu0 %v30
    %v101 = vpop.f32.mrf.mxu0
    %v102 = vadd.f32 0.0, %v101
    %v103 = vpop.f32.mrf.mxu0
    %v104 = vadd.f32 0.0, %v103
    %105 = vmatprep.mubr.f32.mxu0 0.0
    %106 = vmatmul.mubr.f32.gmra.mxu0 %v33
    %v107 = vpop.f32.mrf.mxu0
    %v108 = vadd.f32 0.0, %v107
    %v109 = vpop.f32.mrf.mxu0
    %v110 = vadd.f32 0.0, %v109
    %111 = vdwg.mxu0
    %v112 = vmul.f32 %v102, 0.25
    %v113 = vmul.f32 %v108, 0.25
    %115 = vrot.lane.b32.xlu0 %v102, 64
    %v116 = vpop.permute.xlu0 %115
    %vm117 = vcmask 130048
    %v119 = vsel %vm117, %v112, 0
    %v121 = vsel %vm117, %v116, 0
    %123 = vmatprep.subr.mxu0 0.0
    %124 = vmatpush1.xpose.msra.mxu0 0.0
    %125 = vmatprep.subr.mxu0 0.0
    %126 = vmatpush1.xpose.msra.mxu0 0.0
    %127 = vmatprep.subr.mxu0 0.0
    %128 = vmatpush1.xpose.msra.mxu0 0.0
    %129 = vmatprep.subr.mxu0 0.0
    %130 = vmatpush1.xpose.msra.mxu0 0.0
    %131 = vmatprep.subr.mxu0 0.0
    %132 = vmatpush1.xpose.msra.mxu0 0.0
    %133 = vmatprep.subr.mxu0 0.0
    %134 = vmatpush1.xpose.msra.mxu0 0.0
    %135 = vmatprep.subr.mxu0 0.0
    %136 = vmatpush1.xpose.msra.mxu0 0.0
    %137 = vmatprep.subr.mxu0 0.0
    %138 = vmatpush1.xpose.msra.mxu0 0.0
    %139 = vmatprep.subr.mxu0 0.0
    %140 = vmatpush1.xpose.msra.mxu0 0.0
    %141 = vmatprep.subr.mxu0 0.0
    %142 = vmatpush1.xpose.msra.mxu0 0.0
    %143 = vmatprep.subr.mxu0 0.0
    %144 = vmatpush1.xpose.msra.mxu0 0.0
    %145 = vmatprep.subr.mxu0 0.0
    %146 = vmatpush1.xpose.msra.mxu0 0.0
    %147 = vmatprep.subr.mxu0 0.0
    %148 = vmatpush1.xpose.msra.mxu0 0.0
    %149 = vmatprep.subr.mxu0 0.0
    %150 = vmatpush1.xpose.msra.mxu0 0.0
    %151 = vmatprep.subr.mxu0 0.0
    %152 = vmatpush1.xpose.msra.mxu0 0.0
    %153 = vmatprep.subr.mxu0 0.0
    %154 = vmatpush1.xpose.msra.mxu0 %v121
    %155 = vmatprep.subr.mxu0 0.0
    %156 = vmatpush2.xpose.msra.mxu0 0.0
    %157 = vmatprep.subr.mxu0 0.0
    %158 = vmatpush2.xpose.msra.mxu0 0.0
    %159 = vmatprep.subr.mxu0 0.0
    %160 = vmatpush2.xpose.msra.mxu0 0.0
    %161 = vmatprep.subr.mxu0 0.0
    %162 = vmatpush2.xpose.msra.mxu0 0.0
    %163 = vmatprep.subr.mxu0 0.0
    %164 = vmatpush2.xpose.msra.mxu0 0.0
    %165 = vmatprep.subr.mxu0 0.0
    %166 = vmatpush2.xpose.msra.mxu0 0.0
    %167 = vmatprep.subr.mxu0 0.0
    %168 = vmatpush2.xpose.msra.mxu0 0.0
    %169 = vmatprep.subr.mxu0 0.0
    %170 = vmatpush2.xpose.msra.mxu0 0.0
    %171 = vmatprep.subr.mxu0 0.0
    %172 = vmatpush2.xpose.msra.mxu0 0.0
    %173 = vmatprep.subr.mxu0 0.0
    %174 = vmatpush2.xpose.msra.mxu0 0.0
    %175 = vmatprep.subr.mxu0 0.0
    %176 = vmatpush2.xpose.msra.mxu0 0.0
    %177 = vmatprep.subr.mxu0 0.0
    %178 = vmatpush2.xpose.msra.mxu0 0.0
    %179 = vmatprep.subr.mxu0 0.0
    %180 = vmatpush2.xpose.msra.mxu0 0.0
    %181 = vmatprep.subr.mxu0 0.0
    %182 = vmatpush2.xpose.msra.mxu0 0.0
    %183 = vmatprep.subr.mxu0 0.0
    %184 = vmatpush2.xpose.msra.mxu0 0.0
    %185 = vmatprep.subr.mxu0 0.0
    %186 = vmatpush2.xpose.msra.mxu0 0.0
    %187 = vmatprep.mubr.f32.mxu0 0.0
    %188 = vmatmul.mubr.f32.gmra.mxu0 %v119
    %v189 = vpop.f32.mrf.mxu0
    %v190 = vadd.f32 0.0, %v189
    %v191 = vpop.f32.mrf.mxu0
    %192 = vdwg.mxu0
    %194 = vrot.lane.b32.xlu0 %v108, 64
    %v195 = vpop.permute.xlu0 %194
    %v197 = vsel %vm117, %v113, 0
    %v199 = vsel %vm117, %v195, 0
    %201 = vmatprep.subr.mxu0 0.0
    %202 = vmatpush1.xpose.msra.mxu0 0.0
    %203 = vmatprep.subr.mxu0 0.0
    %204 = vmatpush1.xpose.msra.mxu0 0.0
    %205 = vmatprep.subr.mxu0 0.0
    %206 = vmatpush1.xpose.msra.mxu0 0.0
    %207 = vmatprep.subr.mxu0 0.0
    %208 = vmatpush1.xpose.msra.mxu0 0.0
    %209 = vmatprep.subr.mxu0 0.0
    %210 = vmatpush1.xpose.msra.mxu0 0.0
    %211 = vmatprep.subr.mxu0 0.0
    %212 = vmatpush1.xpose.msra.mxu0 0.0
    %213 = vmatprep.subr.mxu0 0.0
    %214 = vmatpush1.xpose.msra.mxu0 0.0
    %215 = vmatprep.subr.mxu0 0.0
    %216 = vmatpush1.xpose.msra.mxu0 0.0
    %217 = vmatprep.subr.mxu0 0.0
    %218 = vmatpush1.xpose.msra.mxu0 0.0
    %219 = vmatprep.subr.mxu0 0.0
    %220 = vmatpush1.xpose.msra.mxu0 0.0
    %221 = vmatprep.subr.mxu0 0.0
    %222 = vmatpush1.xpose.msra.mxu0 0.0
    %223 = vmatprep.subr.mxu0 0.0
    %224 = vmatpush1.xpose.msra.mxu0 0.0
    %225 = vmatprep.subr.mxu0 0.0
    %226 = vmatpush1.xpose.msra.mxu0 0.0
    %227 = vmatprep.subr.mxu0 0.0
    %228 = vmatpush1.xpose.msra.mxu0 0.0
    %229 = vmatprep.subr.mxu0 0.0
    %230 = vmatpush1.xpose.msra.mxu0 0.0
    %231 = vmatprep.subr.mxu0 0.0
    %232 = vmatpush1.xpose.msra.mxu0 %v199
    %233 = vmatprep.subr.mxu0 0.0
    %234 = vmatpush2.xpose.msra.mxu0 0.0
    %235 = vmatprep.subr.mxu0 0.0
    %236 = vmatpush2.xpose.msra.mxu0 0.0
    %237 = vmatprep.subr.mxu0 0.0
    %238 = vmatpush2.xpose.msra.mxu0 0.0
    %239 = vmatprep.subr.mxu0 0.0
    %240 = vmatpush2.xpose.msra.mxu0 0.0
    %241 = vmatprep.subr.mxu0 0.0
    %242 = vmatpush2.xpose.msra.mxu0 0.0
    %243 = vmatprep.subr.mxu0 0.0
    %244 = vmatpush2.xpose.msra.mxu0 0.0
    %245 = vmatprep.subr.mxu0 0.0
    %246 = vmatpush2.xpose.msra.mxu0 0.0
    %247 = vmatprep.subr.mxu0 0.0
    %248 = vmatpush2.xpose.msra.mxu0 0.0
    %249 = vmatprep.subr.mxu0 0.0
    %250 = vmatpush2.xpose.msra.mxu0 0.0
    %251 = vmatprep.subr.mxu0 0.0
    %252 = vmatpush2.xpose.msra.mxu0 0.0
    %253 = vmatprep.subr.mxu0 0.0
    %254 = vmatpush2.xpose.msra.mxu0 0.0
    %255 = vmatprep.subr.mxu0 0.0
    %256 = vmatpush2.xpose.msra.mxu0 0.0
    %257 = vmatprep.subr.mxu0 0.0
    %258 = vmatpush2.xpose.msra.mxu0 0.0
    %259 = vmatprep.subr.mxu0 0.0
    %260 = vmatpush2.xpose.msra.mxu0 0.0
    %261 = vmatprep.subr.mxu0 0.0
    %262 = vmatpush2.xpose.msra.mxu0 0.0
    %263 = vmatprep.subr.mxu0 0.0
    %264 = vmatpush2.xpose.msra.mxu0 0.0
    %265 = vmatprep.mubr.f32.mxu0 0.0
    %266 = vmatmul.mubr.f32.gmra.mxu0 %v197
    %v267 = vpop.f32.mrf.mxu0
    %v268 = vadd.f32 0.0, %v267
    %v269 = vpop.f32.mrf.mxu0
    %270 = vdwg.mxu0
    %vm271 = vcmask 64512
    %v272 = vsel %vm271, %v190, -inf
    %273 = vmax.xlane.f32.xlu0 %v272
    %v274 = vpop.xlane.xlu0 %273
    %v275 = vsel %vm271, %v268, -inf
    %276 = vmax.xlane.f32.xlu0 %v275
    %v277 = vpop.xlane.xlu0 %276
    %v278 = vsub.f32 %v190, %v274
    %v279 = vsub.f32 %v268, %v277
    %v280 = vmul.f32 %v278, 1.442695
    %v281 = vpow.pop %v280
    %v282 = vmul.f32 %v279, 1.442695
    %v283 = vpow.pop %v282
    %v284 = vsel %vm271, %v281, 0.0
    %285 = vadd.xlane.f32.xlu0 %v284
    %v286 = vpop.xlane.xlu0 %285
    %v287 = vsel %vm271, %v283, 0.0
    %288 = vadd.xlane.f32.xlu0 %v287
    %v289 = vpop.xlane.xlu0 %288
    %v290 = vrcp.pop %v286
    %v291 = vrcp.pop %v289
    %v292 = vmul.f32 %v281, %v290
    %v293 = vmul.f32 %v283, %v291
    %v295 = vsel %vm271, %v292, 0
    %297 = vmatprep.subr.mxu0 0.0
    %298 = vmatpush1.msra.mxu0 0.0
    %299 = vmatprep.subr.mxu0 0.0
    %300 = vmatpush1.msra.mxu0 0.0
    %301 = vmatprep.subr.mxu0 0.0
    %302 = vmatpush1.msra.mxu0 0.0
    %303 = vmatprep.subr.mxu0 0.0
    %304 = vmatpush1.msra.mxu0 0.0
    %305 = vmatprep.subr.mxu0 0.0
    %306 = vmatpush1.msra.mxu0 0.0
    %307 = vmatprep.subr.mxu0 0.0
    %308 = vmatpush1.msra.mxu0 0.0
    %309 = vmatprep.subr.mxu0 0.0
    %310 = vmatpush1.msra.mxu0 0.0
    %311 = vmatprep.subr.mxu0 0.0
    %312 = vmatpush1.msra.mxu0 0.0
    %313 = vmatprep.subr.mxu0 0.0
    %314 = vmatpush1.msra.mxu0 0.0
    %315 = vmatprep.subr.mxu0 0.0
    %316 = vmatpush1.msra.mxu0 0.0
    %317 = vmatprep.subr.mxu0 0.0
    %318 = vmatpush1.msra.mxu0 0.0
    %319 = vmatprep.subr.mxu0 0.0
    %320 = vmatpush1.msra.mxu0 0.0
    %321 = vmatprep.subr.mxu0 0.0
    %322 = vmatpush1.msra.mxu0 0.0
    %323 = vmatprep.subr.mxu0 0.0
    %324 = vmatpush1.msra.mxu0 0.0
    %325 = vmatprep.subr.mxu0 0.0
    %326 = vmatpush1.msra.mxu0 0.0
    %327 = vmatprep.subr.mxu0 0.0
    %328 = vmatpush1.msra.mxu0 %v104
    %329 = vmatprep.subr.mxu0 0.0
    %330 = vmatpush2.msra.mxu0 0.0
    %331 = vmatprep.subr.mxu0 0.0
    %332 = vmatpush2.msra.mxu0 0.0
    %333 = vmatprep.subr.mxu0 0.0
    %334 = vmatpush2.msra.mxu0 0.0
    %335 = vmatprep.subr.mxu0 0.0
    %336 = vmatpush2.msra.mxu0 0.0
    %337 = vmatprep.subr.mxu0 0.0
    %338 = vmatpush2.msra.mxu0 0.0
    %339 = vmatprep.subr.mxu0 0.0
    %340 = vmatpush2.msra.mxu0 0.0
    %341 = vmatprep.subr.mxu0 0.0
    %342 = vmatpush2.msra.mxu0 0.0
    %343 = vmatprep.subr.mxu0 0.0
    %344 = vmatpush2.msra.mxu0 0.0
    %345 = vmatprep.subr.mxu0 0.0
    %346 = vmatpush2.msra.mxu0 0.0
    %347 = vmatprep.subr.mxu0 0.0
    %348 = vmatpush2.msra.mxu0 0.0
    %349 = vmatprep.subr.mxu0 0.0
    %350 = vmatpush2.msra.mxu0 0.0
    %351 = vmatprep.subr.mxu0 0.0
    %352 = vmatpush2.msra.mxu0 0.0
    %353 = vmatprep.subr.mxu0 0.0
    %354 = vmatpush2.msra.mxu0 0.0
    %355 = vmatprep.subr.mxu0 0.0
    %356 = vmatpush2.msra.mxu0 0.0
    %357 = vmatprep.subr.mxu0 0.0
    %358 = vmatpush2.msra.mxu0 0.0
    %359 = vmatprep.subr.mxu0 0.0
    %360 = vmatpush2.msra.mxu0 0.0
    %361 = vmatprep.mubr.f32.mxu0 0.0
    %362 = vmatmul.mubr.f32.gmra.mxu0 %v295
    %v363 = vpop.f32.mrf.mxu0
    %v364 = vadd.f32 0.0, %v363
    %v365 = vpop.f32.mrf.mxu0
    %366 = vdwg.mxu0
    %v368 = vsel %vm271, %v293, 0
    %370 = vmatprep.subr.mxu0 0.0
    %371 = vmatpush1.msra.mxu0 0.0
    %372 = vmatprep.subr.mxu0 0.0
    %373 = vmatpush1.msra.mxu0 0.0
    %374 = vmatprep.subr.mxu0 0.0
    %375 = vmatpush1.msra.mxu0 0.0
    %376 = vmatprep.subr.mxu0 0.0
    %377 = vmatpush1.msra.mxu0 0.0
    %378 = vmatprep.subr.mxu0 0.0
    %379 = vmatpush1.msra.mxu0 0.0
    %380 = vmatprep.subr.mxu0 0.0
    %381 = vmatpush1.msra.mxu0 0.0
    %382 = vmatprep.subr.mxu0 0.0
    %383 = vmatpush1.msra.mxu0 0.0
    %384 = vmatprep.subr.mxu0 0.0
    %385 = vmatpush1.msra.mxu0 0.0
    %386 = vmatprep.subr.mxu0 0.0
    %387 = vmatpush1.msra.mxu0 0.0
    %388 = vmatprep.subr.mxu0 0.0
    %389 = vmatpush1.msra.mxu0 0.0
    %390 = vmatprep.subr.mxu0 0.0
    %391 = vmatpush1.msra.mxu0 0.0
    %392 = vmatprep.subr.mxu0 0.0
    %393 = vmatpush1.msra.mxu0 0.0
    %394 = vmatprep.subr.mxu0 0.0
    %395 = vmatpush1.msra.mxu0 0.0
    %396 = vmatprep.subr.mxu0 0.0
    %397 = vmatpush1.msra.mxu0 0.0
    %398 = vmatprep.subr.mxu0 0.0
    %399 = vmatpush1.msra.mxu0 0.0
    %400 = vmatprep.subr.mxu0 0.0
    %401 = vmatpush1.msra.mxu0 %v110
    %402 = vmatprep.subr.mxu0 0.0
    %403 = vmatpush2.msra.mxu0 0.0
    %404 = vmatprep.subr.mxu0 0.0
    %405 = vmatpush2.msra.mxu0 0.0
    %406 = vmatprep.subr.mxu0 0.0
    %407 = vmatpush2.msra.mxu0 0.0
    %408 = vmatprep.subr.mxu0 0.0
    %409 = vmatpush2.msra.mxu0 0.0
    %410 = vmatprep.subr.mxu0 0.0
    %411 = vmatpush2.msra.mxu0 0.0
    %412 = vmatprep.subr.mxu0 0.0
    %413 = vmatpush2.msra.mxu0 0.0
    %414 = vmatprep.subr.mxu0 0.0
    %415 = vmatpush2.msra.mxu0 0.0
    %416 = vmatprep.subr.mxu0 0.0
    %417 = vmatpush2.msra.mxu0 0.0
    %418 = vmatprep.subr.mxu0 0.0
    %419 = vmatpush2.msra.mxu0 0.0
    %420 = vmatprep.subr.mxu0 0.0
    %421 = vmatpush2.msra.mxu0 0.0
    %422 = vmatprep.subr.mxu0 0.0
    %423 = vmatpush2.msra.mxu0 0.0
    %424 = vmatprep.subr.mxu0 0.0
    %425 = vmatpush2.msra.mxu0 0.0
    %426 = vmatprep.subr.mxu0 0.0
    %427 = vmatpush2.msra.mxu0 0.0
    %428 = vmatprep.subr.mxu0 0.0
    %429 = vmatpush2.msra.mxu0 0.0
    %430 = vmatprep.subr.mxu0 0.0
    %431 = vmatpush2.msra.mxu0 0.0
    %432 = vmatprep.subr.mxu0 0.0
    %433 = vmatpush2.msra.mxu0 0.0
    %434 = vmatprep.mubr.f32.mxu0 0.0
    %435 = vmatmul.mubr.f32.gmra.mxu0 %v368
    %v436 = vpop.f32.mrf.mxu0
    %v437 = vadd.f32 0.0, %v436
    %v438 = vpop.f32.mrf.mxu0
    %439 = vdwg.mxu0
    %v440 = vld [vmem:[%s2] sm:$0xff]
    %v441 = vld [vmem:[%s2 + $0x8] sm:$0xff]
    %442 = vrot.lane.b32.xlu0 %v112, 112
    %v443 = vpop.permute.xlu0 %442
    %444 = vrot.lane.b32.xlu0 %v102, 48
    %v445 = vpop.permute.xlu0 %444
    %v446 = vsel %vm117, %v443, 0
    %v448 = vsel %vm117, %v445, 0
    %450 = vmatprep.subr.mxu0 0.0
    %451 = vmatpush1.xpose.msra.mxu0 0.0
    %452 = vmatprep.subr.mxu0 0.0
    %453 = vmatpush1.xpose.msra.mxu0 0.0
    %454 = vmatprep.subr.mxu0 0.0
    %455 = vmatpush1.xpose.msra.mxu0 0.0
    %456 = vmatprep.subr.mxu0 0.0
    %457 = vmatpush1.xpose.msra.mxu0 0.0
    %458 = vmatprep.subr.mxu0 0.0
    %459 = vmatpush1.xpose.msra.mxu0 0.0
    %460 = vmatprep.subr.mxu0 0.0
    %461 = vmatpush1.xpose.msra.mxu0 0.0
    %462 = vmatprep.subr.mxu0 0.0
    %463 = vmatpush1.xpose.msra.mxu0 0.0
    %464 = vmatprep.subr.mxu0 0.0
    %465 = vmatpush1.xpose.msra.mxu0 0.0
    %466 = vmatprep.subr.mxu0 0.0
    %467 = vmatpush1.xpose.msra.mxu0 0.0
    %468 = vmatprep.subr.mxu0 0.0
    %469 = vmatpush1.xpose.msra.mxu0 0.0
    %470 = vmatprep.subr.mxu0 0.0
    %471 = vmatpush1.xpose.msra.mxu0 0.0
    %472 = vmatprep.subr.mxu0 0.0
    %473 = vmatpush1.xpose.msra.mxu0 0.0
    %474 = vmatprep.subr.mxu0 0.0
    %475 = vmatpush1.xpose.msra.mxu0 0.0
    %476 = vmatprep.subr.mxu0 0.0
    %477 = vmatpush1.xpose.msra.mxu0 0.0
    %478 = vmatprep.subr.mxu0 0.0
    %479 = vmatpush1.xpose.msra.mxu0 0.0
    %480 = vmatprep.subr.mxu0 0.0
    %481 = vmatpush1.xpose.msra.mxu0 %v448
    %482 = vmatprep.subr.mxu0 0.0
    %483 = vmatpush2.xpose.msra.mxu0 0.0
    %484 = vmatprep.subr.mxu0 0.0
    %485 = vmatpush2.xpose.msra.mxu0 0.0
    %486 = vmatprep.subr.mxu0 0.0
    %487 = vmatpush2.xpose.msra.mxu0 0.0
    %488 = vmatprep.subr.mxu0 0.0
    %489 = vmatpush2.xpose.msra.mxu0 0.0
    %490 = vmatprep.subr.mxu0 0.0
    %491 = vmatpush2.xpose.msra.mxu0 0.0
    %492 = vmatprep.subr.mxu0 0.0
    %493 = vmatpush2.xpose.msra.mxu0 0.0
    %494 = vmatprep.subr.mxu0 0.0
    %495 = vmatpush2.xpose.msra.mxu0 0.0
    %496 = vmatprep.subr.mxu0 0.0
    %497 = vmatpush2.xpose.msra.mxu0 0.0
    %498 = vmatprep.subr.mxu0 0.0
    %499 = vmatpush2.xpose.msra.mxu0 0.0
    %500 = vmatprep.subr.mxu0 0.0
    %501 = vmatpush2.xpose.msra.mxu0 0.0
    %502 = vmatprep.subr.mxu0 0.0
    %503 = vmatpush2.xpose.msra.mxu0 0.0
    %504 = vmatprep.subr.mxu0 0.0
    %505 = vmatpush2.xpose.msra.mxu0 0.0
    %506 = vmatprep.subr.mxu0 0.0
    %507 = vmatpush2.xpose.msra.mxu0 0.0
    %508 = vmatprep.subr.mxu0 0.0
    %509 = vmatpush2.xpose.msra.mxu0 0.0
    %510 = vmatprep.subr.mxu0 0.0
    %511 = vmatpush2.xpose.msra.mxu0 0.0
    %512 = vmatprep.subr.mxu0 0.0
    %513 = vmatpush2.xpose.msra.mxu0 0.0
    %514 = vmatprep.mubr.f32.mxu0 0.0
    %515 = vmatmul.mubr.f32.gmra.mxu0 %v446
    %v516 = vpop.f32.mrf.mxu0
    %v517 = vadd.f32 0.0, %v516
    %v518 = vpop.f32.mrf.mxu0
    %519 = vdwg.mxu0
    %520 = vrot.lane.b32.xlu0 %v113, 112
    %v521 = vpop.permute.xlu0 %520
    %522 = vrot.lane.b32.xlu0 %v108, 48
    %v523 = vpop.permute.xlu0 %522
    %v524 = vsel %vm117, %v521, 0
    %v526 = vsel %vm117, %v523, 0
    %528 = vmatprep.subr.mxu0 0.0
    %529 = vmatpush1.xpose.msra.mxu0 0.0
    %530 = vmatprep.subr.mxu0 0.0
    %531 = vmatpush1.xpose.msra.mxu0 0.0
    %532 = vmatprep.subr.mxu0 0.0
    %533 = vmatpush1.xpose.msra.mxu0 0.0
    %534 = vmatprep.subr.mxu0 0.0
    %535 = vmatpush1.xpose.msra.mxu0 0.0
    %536 = vmatprep.subr.mxu0 0.0
    %537 = vmatpush1.xpose.msra.mxu0 0.0
    %538 = vmatprep.subr.mxu0 0.0
    %539 = vmatpush1.xpose.msra.mxu0 0.0
    %540 = vmatprep.subr.mxu0 0.0
    %541 = vmatpush1.xpose.msra.mxu0 0.0
    %542 = vmatprep.subr.mxu0 0.0
    %543 = vmatpush1.xpose.msra.mxu0 0.0
    %544 = vmatprep.subr.mxu0 0.0
    %545 = vmatpush1.xpose.msra.mxu0 0.0
    %546 = vmatprep.subr.mxu0 0.0
    %547 = vmatpush1.xpose.msra.mxu0 0.0
    %548 = vmatprep.subr.mxu0 0.0
    %549 = vmatpush1.xpose.msra.mxu0 0.0
    %550 = vmatprep.subr.mxu0 0.0
    %551 = vmatpush1.xpose.msra.mxu0 0.0
    %552 = vmatprep.subr.mxu0 0.0
    %553 = vmatpush1.xpose.msra.mxu0 0.0
    %554 = vmatprep.subr.mxu0 0.0
    %555 = vmatpush1.xpose.msra.mxu0 0.0
    %556 = vmatprep.subr.mxu0 0.0
    %557 = vmatpush1.xpose.msra.mxu0 0.0
    %558 = vmatprep.subr.mxu0 0.0
    %559 = vmatpush1.xpose.msra.mxu0 %v526
    %560 = vmatprep.subr.mxu0 0.0
    %561 = vmatpush2.xpose.msra.mxu0 0.0
    %562 = vmatprep.subr.mxu0 0.0
    %563 = vmatpush2.xpose.msra.mxu0 0.0
    %564 = vmatprep.subr.mxu0 0.0
    %565 = vmatpush2.xpose.msra.mxu0 0.0
    %566 = vmatprep.subr.mxu0 0.0
    %567 = vmatpush2.xpose.msra.mxu0 0.0
    %568 = vmatprep.subr.mxu0 0.0
    %569 = vmatpush2.xpose.msra.mxu0 0.0
    %570 = vmatprep.subr.mxu0 0.0
    %571 = vmatpush2.xpose.msra.mxu0 0.0
    %572 = vmatprep.subr.mxu0 0.0
    %573 = vmatpush2.xpose.msra.mxu0 0.0
    %574 = vmatprep.subr.mxu0 0.0
    %575 = vmatpush2.xpose.msra.mxu0 0.0
    %576 = vmatprep.subr.mxu0 0.0
    %577 = vmatpush2.xpose.msra.mxu0 0.0
    %578 = vmatprep.subr.mxu0 0.0
    %579 = vmatpush2.xpose.msra.mxu0 0.0
    %580 = vmatprep.subr.mxu0 0.0
    %581 = vmatpush2.xpose.msra.mxu0 0.0
    %582 = vmatprep.subr.mxu0 0.0
    %583 = vmatpush2.xpose.msra.mxu0 0.0
    %584 = vmatprep.subr.mxu0 0.0
    %585 = vmatpush2.xpose.msra.mxu0 0.0
    %586 = vmatprep.subr.mxu0 0.0
    %587 = vmatpush2.xpose.msra.mxu0 0.0
    %588 = vmatprep.subr.mxu0 0.0
    %589 = vmatpush2.xpose.msra.mxu0 0.0
    %590 = vmatprep.subr.mxu0 0.0
    %591 = vmatpush2.xpose.msra.mxu0 0.0
    %592 = vmatprep.mubr.f32.mxu0 0.0
    %593 = vmatmul.mubr.f32.gmra.mxu0 %v524
    %v594 = vpop.f32.mrf.mxu0
    %v595 = vadd.f32 0.0, %v594
    %v596 = vpop.f32.mrf.mxu0
    %597 = vdwg.mxu0
    %v598 = vsel %vm271, %v517, -inf
    %599 = vmax.xlane.f32.xlu0 %v598
    %v600 = vpop.xlane.xlu0 %599
    %v601 = vsel %vm271, %v595, -inf
    %602 = vmax.xlane.f32.xlu0 %v601
    %v603 = vpop.xlane.xlu0 %602
    %v604 = vsub.f32 %v517, %v600
    %v605 = vsub.f32 %v595, %v603
    %v606 = vmul.f32 %v604, 1.442695
    %v607 = vpow.pop %v606
    %v608 = vmul.f32 %v605, 1.442695
    %v609 = vpow.pop %v608
    %v610 = vsel %vm271, %v607, 0.0
    %611 = vadd.xlane.f32.xlu0 %v610
    %v612 = vpop.xlane.xlu0 %611
    %v613 = vsel %vm271, %v609, 0.0
    %614 = vadd.xlane.f32.xlu0 %v613
    %v615 = vpop.xlane.xlu0 %614
    %v616 = vrcp.pop %v612
    %v617 = vrcp.pop %v615
    %v618 = vmul.f32 %v607, %v616
    %v619 = vmul.f32 %v609, %v617
    %621 = vrot.lane.b32.xlu0 %v104, 112
    %v622 = vpop.permute.xlu0 %621
    %v625 = vsel %vm271, %v618, 0
    %627 = vmatprep.subr.mxu0 0.0
    %628 = vmatpush1.msra.mxu0 0.0
    %629 = vmatprep.subr.mxu0 0.0
    %630 = vmatpush1.msra.mxu0 0.0
    %631 = vmatprep.subr.mxu0 0.0
    %632 = vmatpush1.msra.mxu0 0.0
    %633 = vmatprep.subr.mxu0 0.0
    %634 = vmatpush1.msra.mxu0 0.0
    %635 = vmatprep.subr.mxu0 0.0
    %636 = vmatpush1.msra.mxu0 0.0
    %637 = vmatprep.subr.mxu0 0.0
    %638 = vmatpush1.msra.mxu0 0.0
    %639 = vmatprep.subr.mxu0 0.0
    %640 = vmatpush1.msra.mxu0 0.0
    %641 = vmatprep.subr.mxu0 0.0
    %642 = vmatpush1.msra.mxu0 0.0
    %643 = vmatprep.subr.mxu0 0.0
    %644 = vmatpush1.msra.mxu0 0.0
    %645 = vmatprep.subr.mxu0 0.0
    %646 = vmatpush1.msra.mxu0 0.0
    %647 = vmatprep.subr.mxu0 0.0
    %648 = vmatpush1.msra.mxu0 0.0
    %649 = vmatprep.subr.mxu0 0.0
    %650 = vmatpush1.msra.mxu0 0.0
    %651 = vmatprep.subr.mxu0 0.0
    %652 = vmatpush1.msra.mxu0 0.0
    %653 = vmatprep.subr.mxu0 0.0
    %654 = vmatpush1.msra.mxu0 0.0
    %655 = vmatprep.subr.mxu0 0.0
    %656 = vmatpush1.msra.mxu0 0.0
    %657 = vmatprep.subr.mxu0 0.0
    %658 = vmatpush1.msra.mxu0 %v622
    %659 = vmatprep.subr.mxu0 0.0
    %660 = vmatpush2.msra.mxu0 0.0
    %661 = vmatprep.subr.mxu0 0.0
    %662 = vmatpush2.msra.mxu0 0.0
    %663 = vmatprep.subr.mxu0 0.0
    %664 = vmatpush2.msra.mxu0 0.0
    %665 = vmatprep.subr.mxu0 0.0
    %666 = vmatpush2.msra.mxu0 0.0
    %667 = vmatprep.subr.mxu0 0.0
    %668 = vmatpush2.msra.mxu0 0.0
    %669 = vmatprep.subr.mxu0 0.0
    %670 = vmatpush2.msra.mxu0 0.0
    %671 = vmatprep.subr.mxu0 0.0
    %672 = vmatpush2.msra.mxu0 0.0
    %673 = vmatprep.subr.mxu0 0.0
    %674 = vmatpush2.msra.mxu0 0.0
    %675 = vmatprep.subr.mxu0 0.0
    %676 = vmatpush2.msra.mxu0 0.0
    %677 = vmatprep.subr.mxu0 0.0
    %678 = vmatpush2.msra.mxu0 0.0
    %679 = vmatprep.subr.mxu0 0.0
    %680 = vmatpush2.msra.mxu0 0.0
    %681 = vmatprep.subr.mxu0 0.0
    %682 = vmatpush2.msra.mxu0 0.0
    %683 = vmatprep.subr.mxu0 0.0
    %684 = vmatpush2.msra.mxu0 0.0
    %685 = vmatprep.subr.mxu0 0.0
    %686 = vmatpush2.msra.mxu0 0.0
    %687 = vmatprep.subr.mxu0 0.0
    %688 = vmatpush2.msra.mxu0 0.0
    %689 = vmatprep.subr.mxu0 0.0
    %690 = vmatpush2.msra.mxu0 0.0
    %691 = vmatprep.mubr.f32.mxu0 0.0
    %692 = vmatmul.mubr.f32.gmra.mxu0 %v625
    %v693 = vpop.f32.mrf.mxu0
    %v694 = vadd.f32 0.0, %v693
    %v695 = vpop.f32.mrf.mxu0
    %696 = vdwg.mxu0
    %698 = vrot.lane.b32.xlu0 %v110, 112
    %v699 = vpop.permute.xlu0 %698
    %v702 = vsel %vm271, %v619, 0
    %704 = vmatprep.subr.mxu0 0.0
    %705 = vmatpush1.msra.mxu0 0.0
    %706 = vmatprep.subr.mxu0 0.0
    %707 = vmatpush1.msra.mxu0 0.0
    %708 = vmatprep.subr.mxu0 0.0
    %709 = vmatpush1.msra.mxu0 0.0
    %710 = vmatprep.subr.mxu0 0.0
    %711 = vmatpush1.msra.mxu0 0.0
    %712 = vmatprep.subr.mxu0 0.0
    %713 = vmatpush1.msra.mxu0 0.0
    %714 = vmatprep.subr.mxu0 0.0
    %715 = vmatpush1.msra.mxu0 0.0
    %716 = vmatprep.subr.mxu0 0.0
    %717 = vmatpush1.msra.mxu0 0.0
    %718 = vmatprep.subr.mxu0 0.0
    %719 = vmatpush1.msra.mxu0 0.0
    %720 = vmatprep.subr.mxu0 0.0
    %721 = vmatpush1.msra.mxu0 0.0
    %722 = vmatprep.subr.mxu0 0.0
    %723 = vmatpush1.msra.mxu0 0.0
    %724 = vmatprep.subr.mxu0 0.0
    %725 = vmatpush1.msra.mxu0 0.0
    %726 = vmatprep.subr.mxu0 0.0
    %727 = vmatpush1.msra.mxu0 0.0
    %728 = vmatprep.subr.mxu0 0.0
    %729 = vmatpush1.msra.mxu0 0.0
    %730 = vmatprep.subr.mxu0 0.0
    %731 = vmatpush1.msra.mxu0 0.0
    %732 = vmatprep.subr.mxu0 0.0
    %733 = vmatpush1.msra.mxu0 0.0
    %734 = vmatprep.subr.mxu0 0.0
    %735 = vmatpush1.msra.mxu0 %v699
    %736 = vmatprep.subr.mxu0 0.0
    %737 = vmatpush2.msra.mxu0 0.0
    %738 = vmatprep.subr.mxu0 0.0
    %739 = vmatpush2.msra.mxu0 0.0
    %740 = vmatprep.subr.mxu0 0.0
    %741 = vmatpush2.msra.mxu0 0.0
    %742 = vmatprep.subr.mxu0 0.0
    %743 = vmatpush2.msra.mxu0 0.0
    %744 = vmatprep.subr.mxu0 0.0
    %745 = vmatpush2.msra.mxu0 0.0
    %746 = vmatprep.subr.mxu0 0.0
    %747 = vmatpush2.msra.mxu0 0.0
    %748 = vmatprep.subr.mxu0 0.0
    %749 = vmatpush2.msra.mxu0 0.0
    %750 = vmatprep.subr.mxu0 0.0
    %751 = vmatpush2.msra.mxu0 0.0
    %752 = vmatprep.subr.mxu0 0.0
    %753 = vmatpush2.msra.mxu0 0.0
    %754 = vmatprep.subr.mxu0 0.0
    %755 = vmatpush2.msra.mxu0 0.0
    %756 = vmatprep.subr.mxu0 0.0
    %757 = vmatpush2.msra.mxu0 0.0
    %758 = vmatprep.subr.mxu0 0.0
    %759 = vmatpush2.msra.mxu0 0.0
    %760 = vmatprep.subr.mxu0 0.0
    %761 = vmatpush2.msra.mxu0 0.0
    %762 = vmatprep.subr.mxu0 0.0
    %763 = vmatpush2.msra.mxu0 0.0
    %764 = vmatprep.subr.mxu0 0.0
    %765 = vmatpush2.msra.mxu0 0.0
    %766 = vmatprep.subr.mxu0 0.0
    %767 = vmatpush2.msra.mxu0 0.0
    %768 = vmatprep.mubr.f32.mxu0 0.0
    %769 = vmatmul.mubr.f32.gmra.mxu0 %v702
    %v770 = vpop.f32.mrf.mxu0
    %v771 = vadd.f32 0.0, %v770
    %v772 = vpop.f32.mrf.mxu0
    %773 = vdwg.mxu0
    %v774 = vld [vmem:[%s2 + $0x10] sm:$0xff]
    %v775 = vld [vmem:[%s2 + $0x18] sm:$0xff]
    %v777 = vsel %vm117, %v694, 0
    %v780 = vsel %vm117, %v771, 0
    %782 = vmatprep.subr.mxu0 0.0
    %783 = vmatpush1.msra.mxu0 0.0
    %784 = vmatprep.subr.mxu0 0.0
    %785 = vmatpush1.msra.mxu0 0.0
    %786 = vmatprep.subr.mxu0 0.0
    %787 = vmatpush1.msra.mxu0 0.0
    %788 = vmatprep.subr.mxu0 0.0
    %789 = vmatpush1.msra.mxu0 0.0
    %790 = vmatprep.subr.mxu0 0.0
    %791 = vmatpush1.msra.mxu0 0.0
    %792 = vmatprep.subr.mxu0 0.0
    %793 = vmatpush1.msra.mxu0 0.0
    %794 = vmatprep.subr.mxu0 0.0
    %795 = vmatpush1.msra.mxu0 0.0
    %796 = vmatprep.subr.mxu0 0.0
    %797 = vmatpush1.msra.mxu0 0.0
    %798 = vmatprep.subr.mxu0 0.0
    %799 = vmatpush1.msra.mxu0 0.0
    %800 = vmatprep.subr.mxu0 0.0
    %801 = vmatpush1.msra.mxu0 0.0
    %802 = vmatprep.subr.mxu0 0.0
    %803 = vmatpush1.msra.mxu0 0.0
    %804 = vmatprep.subr.mxu0 0.0
    %805 = vmatpush1.msra.mxu0 0.0
    %806 = vmatprep.subr.mxu0 0.0
    %807 = vmatpush1.msra.mxu0 0.0
    %808 = vmatprep.subr.mxu0 0.0
    %809 = vmatpush1.msra.mxu0 0.0
    %810 = vmatprep.subr.mxu0 0.0
    %811 = vmatpush1.msra.mxu0 %v775
    %812 = vmatprep.subr.mxu0 0.0
    %813 = vmatpush1.msra.mxu0 %v774
    %814 = vmatprep.subr.mxu0 0.0
    %815 = vmatpush2.msra.mxu0 0.0
    %816 = vmatprep.subr.mxu0 0.0
    %817 = vmatpush2.msra.mxu0 0.0
    %818 = vmatprep.subr.mxu0 0.0
    %819 = vmatpush2.msra.mxu0 0.0
    %820 = vmatprep.subr.mxu0 0.0
    %821 = vmatpush2.msra.mxu0 0.0
    %822 = vmatprep.subr.mxu0 0.0
    %823 = vmatpush2.msra.mxu0 0.0
    %824 = vmatprep.subr.mxu0 0.0
    %825 = vmatpush2.msra.mxu0 0.0
    %826 = vmatprep.subr.mxu0 0.0
    %827 = vmatpush2.msra.mxu0 0.0
    %828 = vmatprep.subr.mxu0 0.0
    %829 = vmatpush2.msra.mxu0 0.0
    %830 = vmatprep.subr.mxu0 0.0
    %831 = vmatpush2.msra.mxu0 0.0
    %832 = vmatprep.subr.mxu0 0.0
    %833 = vmatpush2.msra.mxu0 0.0
    %834 = vmatprep.subr.mxu0 0.0
    %835 = vmatpush2.msra.mxu0 0.0
    %836 = vmatprep.subr.mxu0 0.0
    %837 = vmatpush2.msra.mxu0 0.0
    %838 = vmatprep.subr.mxu0 0.0
    %839 = vmatpush2.msra.mxu0 0.0
    %840 = vmatprep.subr.mxu0 0.0
    %841 = vmatpush2.msra.mxu0 0.0
    %842 = vmatprep.subr.mxu0 0.0
    %843 = vmatpush2.msra.mxu0 0.0
    %844 = vmatprep.subr.mxu0 0.0
    %845 = vmatpush2.msra.mxu0 0.0
    %846 = vmatprep.mubr.f32.mxu0 0.0
    %847 = vmatmul.mubr.f32.gmra.mxu0 %v777
    %v848 = vpop.f32.mrf.mxu0
    %v849 = vadd.f32 0.0, %v848
    %v850 = vpop.f32.mrf.mxu0
    %851 = vmatprep.mubr.f32.mxu0 0.0
    %852 = vmatmul.mubr.f32.gmra.mxu0 %v780
    %v853 = vpop.f32.mrf.mxu0
    %v854 = vadd.f32 0.0, %v853
    %v855 = vpop.f32.mrf.mxu0
    %856 = vdwg.mxu0
    %v858 = vsel %vm117, %v364, 0
    %v861 = vsel %vm117, %v437, 0
    %863 = vmatprep.subr.mxu0 0.0
    %864 = vmatpush1.msra.mxu0 0.0
    %865 = vmatprep.subr.mxu0 0.0
    %866 = vmatpush1.msra.mxu0 0.0
    %867 = vmatprep.subr.mxu0 0.0
    %868 = vmatpush1.msra.mxu0 0.0
    %869 = vmatprep.subr.mxu0 0.0
    %870 = vmatpush1.msra.mxu0 0.0
    %871 = vmatprep.subr.mxu0 0.0
    %872 = vmatpush1.msra.mxu0 0.0
    %873 = vmatprep.subr.mxu0 0.0
    %874 = vmatpush1.msra.mxu0 0.0
    %875 = vmatprep.subr.mxu0 0.0
    %876 = vmatpush1.msra.mxu0 0.0
    %877 = vmatprep.subr.mxu0 0.0
    %878 = vmatpush1.msra.mxu0 0.0
    %879 = vmatprep.subr.mxu0 0.0
    %880 = vmatpush1.msra.mxu0 0.0
    %881 = vmatprep.subr.mxu0 0.0
    %882 = vmatpush1.msra.mxu0 0.0
    %883 = vmatprep.subr.mxu0 0.0
    %884 = vmatpush1.msra.mxu0 0.0
    %885 = vmatprep.subr.mxu0 0.0
    %886 = vmatpush1.msra.mxu0 0.0
    %887 = vmatprep.subr.mxu0 0.0
    %888 = vmatpush1.msra.mxu0 0.0
    %889 = vmatprep.subr.mxu0 0.0
    %890 = vmatpush1.msra.mxu0 0.0
    %891 = vmatprep.subr.mxu0 0.0
    %892 = vmatpush1.msra.mxu0 %v441
    %893 = vmatprep.subr.mxu0 0.0
    %894 = vmatpush1.msra.mxu0 %v440
    %895 = vmatprep.subr.mxu0 0.0
    %896 = vmatpush2.msra.mxu0 0.0
    %897 = vmatprep.subr.mxu0 0.0
    %898 = vmatpush2.msra.mxu0 0.0
    %899 = vmatprep.subr.mxu0 0.0
    %900 = vmatpush2.msra.mxu0 0.0
    %901 = vmatprep.subr.mxu0 0.0
    %902 = vmatpush2.msra.mxu0 0.0
    %903 = vmatprep.subr.mxu0 0.0
    %904 = vmatpush2.msra.mxu0 0.0
    %905 = vmatprep.subr.mxu0 0.0
    %906 = vmatpush2.msra.mxu0 0.0
    %907 = vmatprep.subr.mxu0 0.0
    %908 = vmatpush2.msra.mxu0 0.0
    %909 = vmatprep.subr.mxu0 0.0
    %910 = vmatpush2.msra.mxu0 0.0
    %911 = vmatprep.subr.mxu0 0.0
    %912 = vmatpush2.msra.mxu0 0.0
    %913 = vmatprep.subr.mxu0 0.0
    %914 = vmatpush2.msra.mxu0 0.0
    %915 = vmatprep.subr.mxu0 0.0
    %916 = vmatpush2.msra.mxu0 0.0
    %917 = vmatprep.subr.mxu0 0.0
    %918 = vmatpush2.msra.mxu0 0.0
    %919 = vmatprep.subr.mxu0 0.0
    %920 = vmatpush2.msra.mxu0 0.0
    %921 = vmatprep.subr.mxu0 0.0
    %922 = vmatpush2.msra.mxu0 0.0
    %923 = vmatprep.subr.mxu0 0.0
    %924 = vmatpush2.msra.mxu0 0.0
    %925 = vmatprep.subr.mxu0 0.0
    %926 = vmatpush2.msra.mxu0 0.0
    %927 = vmatprep.mubr.f32.mxu0 0.0
    %928 = vmatmul.mubr.f32.gmra.mxu0 %v858
    %v929 = vpop.f32.mrf.mxu0
    %v930 = vadd.f32 %v849, %v929
    %v931 = vpop.f32.mrf.mxu0
    %932 = vmatprep.mubr.f32.mxu0 0.0
    %933 = vmatmul.mubr.f32.gmra.mxu0 %v861
    %v934 = vpop.f32.mrf.mxu0
    %v935 = vadd.f32 %v854, %v934
    %v936 = vpop.f32.mrf.mxu0
    %937 = vdwg.mxu0
    %938 = vrot.lane.b32.xlu0 %v112, 96
    %v939 = vpop.permute.xlu0 %938
    %940 = vrot.lane.b32.xlu0 %v102, 32
    %v941 = vpop.permute.xlu0 %940
    %v942 = vsel %vm117, %v939, 0
    %v944 = vsel %vm117, %v941, 0
    %946 = vmatprep.subr.mxu0 0.0
    %947 = vmatpush1.xpose.msra.mxu0 0.0
    %948 = vmatprep.subr.mxu0 0.0
    %949 = vmatpush1.xpose.msra.mxu0 0.0
    %950 = vmatprep.subr.mxu0 0.0
    %951 = vmatpush1.xpose.msra.mxu0 0.0
    %952 = vmatprep.subr.mxu0 0.0
    %953 = vmatpush1.xpose.msra.mxu0 0.0
    %954 = vmatprep.subr.mxu0 0.0
    %955 = vmatpush1.xpose.msra.mxu0 0.0
    %956 = vmatprep.subr.mxu0 0.0
    %957 = vmatpush1.xpose.msra.mxu0 0.0
    %958 = vmatprep.subr.mxu0 0.0
    %959 = vmatpush1.xpose.msra.mxu0 0.0
    %960 = vmatprep.subr.mxu0 0.0
    %961 = vmatpush1.xpose.msra.mxu0 0.0
    %962 = vmatprep.subr.mxu0 0.0
    %963 = vmatpush1.xpose.msra.mxu0 0.0
    %964 = vmatprep.subr.mxu0 0.0
    %965 = vmatpush1.xpose.msra.mxu0 0.0
    %966 = vmatprep.subr.mxu0 0.0
    %967 = vmatpush1.xpose.msra.mxu0 0.0
    %968 = vmatprep.subr.mxu0 0.0
    %969 = vmatpush1.xpose.msra.mxu0 0.0
    %970 = vmatprep.subr.mxu0 0.0
    %971 = vmatpush1.xpose.msra.mxu0 0.0
    %972 = vmatprep.subr.mxu0 0.0
    %973 = vmatpush1.xpose.msra.mxu0 0.0
    %974 = vmatprep.subr.mxu0 0.0
    %975 = vmatpush1.xpose.msra.mxu0 0.0
    %976 = vmatprep.subr.mxu0 0.0
    %977 = vmatpush1.xpose.msra.mxu0 %v944
    %978 = vmatprep.subr.mxu0 0.0
    %979 = vmatpush2.xpose.msra.mxu0 0.0
    %980 = vmatprep.subr.mxu0 0.0
    %981 = vmatpush2.xpose.msra.mxu0 0.0
    %982 = vmatprep.subr.mxu0 0.0
    %983 = vmatpush2.xpose.msra.mxu0 0.0
    %984 = vmatprep.subr.mxu0 0.0
    %985 = vmatpush2.xpose.msra.mxu0 0.0
    %986 = vmatprep.subr.mxu0 0.0
    %987 = vmatpush2.xpose.msra.mxu0 0.0
    %988 = vmatprep.subr.mxu0 0.0
    %989 = vmatpush2.xpose.msra.mxu0 0.0
    %990 = vmatprep.subr.mxu0 0.0
    %991 = vmatpush2.xpose.msra.mxu0 0.0
    %992 = vmatprep.subr.mxu0 0.0
    %993 = vmatpush2.xpose.msra.mxu0 0.0
    %994 = vmatprep.subr.mxu0 0.0
    %995 = vmatpush2.xpose.msra.mxu0 0.0
    %996 = vmatprep.subr.mxu0 0.0
    %997 = vmatpush2.xpose.msra.mxu0 0.0
    %998 = vmatprep.subr.mxu0 0.0
    %999 = vmatpush2.xpose.msra.mxu0 0.0
    %1000 = vmatprep.subr.mxu0 0.0
    %1001 = vmatpush2.xpose.msra.mxu0 0.0
    %1002 = vmatprep.subr.mxu0 0.0
    %1003 = vmatpush2.xpose.msra.mxu0 0.0
    %1004 = vmatprep.subr.mxu0 0.0
    %1005 = vmatpush2.xpose.msra.mxu0 0.0
    %1006 = vmatprep.subr.mxu0 0.0
    %1007 = vmatpush2.xpose.msra.mxu0 0.0
    %1008 = vmatprep.subr.mxu0 0.0
    %1009 = vmatpush2.xpose.msra.mxu0 0.0
    %1010 = vmatprep.mubr.f32.mxu0 0.0
    %1011 = vmatmul.mubr.f32.gmra.mxu0 %v942
    %v1012 = vpop.f32.mrf.mxu0
    %v1013 = vadd.f32 0.0, %v1012
    %v1014 = vpop.f32.mrf.mxu0
    %1015 = vdwg.mxu0
    %1016 = vrot.lane.b32.xlu0 %v113, 96
    %v1017 = vpop.permute.xlu0 %1016
    %1018 = vrot.lane.b32.xlu0 %v108, 32
    %v1019 = vpop.permute.xlu0 %1018
    %v1020 = vsel %vm117, %v1017, 0
    %v1022 = vsel %vm117, %v1019, 0
    %1024 = vmatprep.subr.mxu0 0.0
    %1025 = vmatpush1.xpose.msra.mxu0 0.0
    %1026 = vmatprep.subr.mxu0 0.0
    %1027 = vmatpush1.xpose.msra.mxu0 0.0
    %1028 = vmatprep.subr.mxu0 0.0
    %1029 = vmatpush1.xpose.msra.mxu0 0.0
    %1030 = vmatprep.subr.mxu0 0.0
    %1031 = vmatpush1.xpose.msra.mxu0 0.0
    %1032 = vmatprep.subr.mxu0 0.0
    %1033 = vmatpush1.xpose.msra.mxu0 0.0
    %1034 = vmatprep.subr.mxu0 0.0
    %1035 = vmatpush1.xpose.msra.mxu0 0.0
    %1036 = vmatprep.subr.mxu0 0.0
    %1037 = vmatpush1.xpose.msra.mxu0 0.0
    %1038 = vmatprep.subr.mxu0 0.0
    %1039 = vmatpush1.xpose.msra.mxu0 0.0
    %1040 = vmatprep.subr.mxu0 0.0
    %1041 = vmatpush1.xpose.msra.mxu0 0.0
    %1042 = vmatprep.subr.mxu0 0.0
    %1043 = vmatpush1.xpose.msra.mxu0 0.0
    %1044 = vmatprep.subr.mxu0 0.0
    %1045 = vmatpush1.xpose.msra.mxu0 0.0
    %1046 = vmatprep.subr.mxu0 0.0
    %1047 = vmatpush1.xpose.msra.mxu0 0.0
    %1048 = vmatprep.subr.mxu0 0.0
    %1049 = vmatpush1.xpose.msra.mxu0 0.0
    %1050 = vmatprep.subr.mxu0 0.0
    %1051 = vmatpush1.xpose.msra.mxu0 0.0
    %1052 = vmatprep.subr.mxu0 0.0
    %1053 = vmatpush1.xpose.msra.mxu0 0.0
    %1054 = vmatprep.subr.mxu0 0.0
    %1055 = vmatpush1.xpose.msra.mxu0 %v1022
    %1056 = vmatprep.subr.mxu0 0.0
    %1057 = vmatpush2.xpose.msra.mxu0 0.0
    %1058 = vmatprep.subr.mxu0 0.0
    %1059 = vmatpush2.xpose.msra.mxu0 0.0
    %1060 = vmatprep.subr.mxu0 0.0
    %1061 = vmatpush2.xpose.msra.mxu0 0.0
    %1062 = vmatprep.subr.mxu0 0.0
    %1063 = vmatpush2.xpose.msra.mxu0 0.0
    %1064 = vmatprep.subr.mxu0 0.0
    %1065 = vmatpush2.xpose.msra.mxu0 0.0
    %1066 = vmatprep.subr.mxu0 0.0
    %1067 = vmatpush2.xpose.msra.mxu0 0.0
    %1068 = vmatprep.subr.mxu0 0.0
    %1069 = vmatpush2.xpose.msra.mxu0 0.0
    %1070 = vmatprep.subr.mxu0 0.0
    %1071 = vmatpush2.xpose.msra.mxu0 0.0
    %1072 = vmatprep.subr.mxu0 0.0
    %1073 = vmatpush2.xpose.msra.mxu0 0.0
    %1074 = vmatprep.subr.mxu0 0.0
    %1075 = vmatpush2.xpose.msra.mxu0 0.0
    %1076 = vmatprep.subr.mxu0 0.0
    %1077 = vmatpush2.xpose.msra.mxu0 0.0
    %1078 = vmatprep.subr.mxu0 0.0
    %1079 = vmatpush2.xpose.msra.mxu0 0.0
    %1080 = vmatprep.subr.mxu0 0.0
    %1081 = vmatpush2.xpose.msra.mxu0 0.0
    %1082 = vmatprep.subr.mxu0 0.0
    %1083 = vmatpush2.xpose.msra.mxu0 0.0
    %1084 = vmatprep.subr.mxu0 0.0
    %1085 = vmatpush2.xpose.msra.mxu0 0.0
    %1086 = vmatprep.subr.mxu0 0.0
    %1087 = vmatpush2.xpose.msra.mxu0 0.0
    %1088 = vmatprep.mubr.f32.mxu0 0.0
    %1089 = vmatmul.mubr.f32.gmra.mxu0 %v1020
    %v1090 = vpop.f32.mrf.mxu0
    %v1091 = vadd.f32 0.0, %v1090
    %v1092 = vpop.f32.mrf.mxu0
    %1093 = vdwg.mxu0
    %v1094 = vsel %vm271, %v1013, -inf
    %1095 = vmax.xlane.f32.xlu0 %v1094
    %v1096 = vpop.xlane.xlu0 %1095
    %v1097 = vsel %vm271, %v1091, -inf
    %1098 = vmax.xlane.f32.xlu0 %v1097
    %v1099 = vpop.xlane.xlu0 %1098
    %v1100 = vsub.f32 %v1013, %v1096
    %v1101 = vsub.f32 %v1091, %v1099
    %v1102 = vmul.f32 %v1100, 1.442695
    %v1103 = vpow.pop %v1102
    %v1104 = vmul.f32 %v1101, 1.442695
    %v1105 = vpow.pop %v1104
    %v1106 = vsel %vm271, %v1103, 0.0
    %1107 = vadd.xlane.f32.xlu0 %v1106
    %v1108 = vpop.xlane.xlu0 %1107
    %v1109 = vsel %vm271, %v1105, 0.0
    %1110 = vadd.xlane.f32.xlu0 %v1109
    %v1111 = vpop.xlane.xlu0 %1110
    %v1112 = vrcp.pop %v1108
    %v1113 = vrcp.pop %v1111
    %v1114 = vmul.f32 %v1103, %v1112
    %v1115 = vmul.f32 %v1105, %v1113
    %1116 = vrot.lane.b32.xlu0 %v104, 96
    %v1117 = vpop.permute.xlu0 %1116
    %v1120 = vsel %vm271, %v1114, 0
    %1122 = vmatprep.subr.mxu0 0.0
    %1123 = vmatpush1.msra.mxu0 0.0
    %1124 = vmatprep.subr.mxu0 0.0
    %1125 = vmatpush1.msra.mxu0 0.0
    %1126 = vmatprep.subr.mxu0 0.0
    %1127 = vmatpush1.msra.mxu0 0.0
    %1128 = vmatprep.subr.mxu0 0.0
    %1129 = vmatpush1.msra.mxu0 0.0
    %1130 = vmatprep.subr.mxu0 0.0
    %1131 = vmatpush1.msra.mxu0 0.0
    %1132 = vmatprep.subr.mxu0 0.0
    %1133 = vmatpush1.msra.mxu0 0.0
    %1134 = vmatprep.subr.mxu0 0.0
    %1135 = vmatpush1.msra.mxu0 0.0
    %1136 = vmatprep.subr.mxu0 0.0
    %1137 = vmatpush1.msra.mxu0 0.0
    %1138 = vmatprep.subr.mxu0 0.0
    %1139 = vmatpush1.msra.mxu0 0.0
    %1140 = vmatprep.subr.mxu0 0.0
    %1141 = vmatpush1.msra.mxu0 0.0
    %1142 = vmatprep.subr.mxu0 0.0
    %1143 = vmatpush1.msra.mxu0 0.0
    %1144 = vmatprep.subr.mxu0 0.0
    %1145 = vmatpush1.msra.mxu0 0.0
    %1146 = vmatprep.subr.mxu0 0.0
    %1147 = vmatpush1.msra.mxu0 0.0
    %1148 = vmatprep.subr.mxu0 0.0
    %1149 = vmatpush1.msra.mxu0 0.0
    %1150 = vmatprep.subr.mxu0 0.0
    %1151 = vmatpush1.msra.mxu0 0.0
    %1152 = vmatprep.subr.mxu0 0.0
    %1153 = vmatpush1.msra.mxu0 %v1117
    %1154 = vmatprep.subr.mxu0 0.0
    %1155 = vmatpush2.msra.mxu0 0.0
    %1156 = vmatprep.subr.mxu0 0.0
    %1157 = vmatpush2.msra.mxu0 0.0
    %1158 = vmatprep.subr.mxu0 0.0
    %1159 = vmatpush2.msra.mxu0 0.0
    %1160 = vmatprep.subr.mxu0 0.0
    %1161 = vmatpush2.msra.mxu0 0.0
    %1162 = vmatprep.subr.mxu0 0.0
    %1163 = vmatpush2.msra.mxu0 0.0
    %1164 = vmatprep.subr.mxu0 0.0
    %1165 = vmatpush2.msra.mxu0 0.0
    %1166 = vmatprep.subr.mxu0 0.0
    %1167 = vmatpush2.msra.mxu0 0.0
    %1168 = vmatprep.subr.mxu0 0.0
    %1169 = vmatpush2.msra.mxu0 0.0
    %1170 = vmatprep.subr.mxu0 0.0
    %1171 = vmatpush2.msra.mxu0 0.0
    %1172 = vmatprep.subr.mxu0 0.0
    %1173 = vmatpush2.msra.mxu0 0.0
    %1174 = vmatprep.subr.mxu0 0.0
    %1175 = vmatpush2.msra.mxu0 0.0
    %1176 = vmatprep.subr.mxu0 0.0
    %1177 = vmatpush2.msra.mxu0 0.0
    %1178 = vmatprep.subr.mxu0 0.0
    %1179 = vmatpush2.msra.mxu0 0.0
    %1180 = vmatprep.subr.mxu0 0.0
    %1181 = vmatpush2.msra.mxu0 0.0
    %1182 = vmatprep.subr.mxu0 0.0
    %1183 = vmatpush2.msra.mxu0 0.0
    %1184 = vmatprep.subr.mxu0 0.0
    %1185 = vmatpush2.msra.mxu0 0.0
    %1186 = vmatprep.mubr.f32.mxu0 0.0
    %1187 = vmatmul.mubr.f32.gmra.mxu0 %v1120
    %v1188 = vpop.f32.mrf.mxu0
    %v1189 = vadd.f32 0.0, %v1188
    %v1190 = vpop.f32.mrf.mxu0
    %1191 = vdwg.mxu0
    %1192 = vrot.lane.b32.xlu0 %v110, 96
    %v1193 = vpop.permute.xlu0 %1192
    %v1196 = vsel %vm271, %v1115, 0
    %1198 = vmatprep.subr.mxu0 0.0
    %1199 = vmatpush1.msra.mxu0 0.0
    %1200 = vmatprep.subr.mxu0 0.0
    %1201 = vmatpush1.msra.mxu0 0.0
    %1202 = vmatprep.subr.mxu0 0.0
    %1203 = vmatpush1.msra.mxu0 0.0
    %1204 = vmatprep.subr.mxu0 0.0
    %1205 = vmatpush1.msra.mxu0 0.0
    %1206 = vmatprep.subr.mxu0 0.0
    %1207 = vmatpush1.msra.mxu0 0.0
    %1208 = vmatprep.subr.mxu0 0.0
    %1209 = vmatpush1.msra.mxu0 0.0
    %1210 = vmatprep.subr.mxu0 0.0
    %1211 = vmatpush1.msra.mxu0 0.0
    %1212 = vmatprep.subr.mxu0 0.0
    %1213 = vmatpush1.msra.mxu0 0.0
    %1214 = vmatprep.subr.mxu0 0.0
    %1215 = vmatpush1.msra.mxu0 0.0
    %1216 = vmatprep.subr.mxu0 0.0
    %1217 = vmatpush1.msra.mxu0 0.0
    %1218 = vmatprep.subr.mxu0 0.0
    %1219 = vmatpush1.msra.mxu0 0.0
    %1220 = vmatprep.subr.mxu0 0.0
    %1221 = vmatpush1.msra.mxu0 0.0
    %1222 = vmatprep.subr.mxu0 0.0
    %1223 = vmatpush1.msra.mxu0 0.0
    %1224 = vmatprep.subr.mxu0 0.0
    %1225 = vmatpush1.msra.mxu0 0.0
    %1226 = vmatprep.subr.mxu0 0.0
    %1227 = vmatpush1.msra.mxu0 0.0
    %1228 = vmatprep.subr.mxu0 0.0
    %1229 = vmatpush1.msra.mxu0 %v1193
    %1230 = vmatprep.subr.mxu0 0.0
    %1231 = vmatpush2.msra.mxu0 0.0
    %1232 = vmatprep.subr.mxu0 0.0
    %1233 = vmatpush2.msra.mxu0 0.0
    %1234 = vmatprep.subr.mxu0 0.0
    %1235 = vmatpush2.msra.mxu0 0.0
    %1236 = vmatprep.subr.mxu0 0.0
    %1237 = vmatpush2.msra.mxu0 0.0
    %1238 = vmatprep.subr.mxu0 0.0
    %1239 = vmatpush2.msra.mxu0 0.0
    %1240 = vmatprep.subr.mxu0 0.0
    %1241 = vmatpush2.msra.mxu0 0.0
    %1242 = vmatprep.subr.mxu0 0.0
    %1243 = vmatpush2.msra.mxu0 0.0
    %1244 = vmatprep.subr.mxu0 0.0
    %1245 = vmatpush2.msra.mxu0 0.0
    %1246 = vmatprep.subr.mxu0 0.0
    %1247 = vmatpush2.msra.mxu0 0.0
    %1248 = vmatprep.subr.mxu0 0.0
    %1249 = vmatpush2.msra.mxu0 0.0
    %1250 = vmatprep.subr.mxu0 0.0
    %1251 = vmatpush2.msra.mxu0 0.0
    %1252 = vmatprep.subr.mxu0 0.0
    %1253 = vmatpush2.msra.mxu0 0.0
    %1254 = vmatprep.subr.mxu0 0.0
    %1255 = vmatpush2.msra.mxu0 0.0
    %1256 = vmatprep.subr.mxu0 0.0
    %1257 = vmatpush2.msra.mxu0 0.0
    %1258 = vmatprep.subr.mxu0 0.0
    %1259 = vmatpush2.msra.mxu0 0.0
    %1260 = vmatprep.subr.mxu0 0.0
    %1261 = vmatpush2.msra.mxu0 0.0
    %1262 = vmatprep.mubr.f32.mxu0 0.0
    %1263 = vmatmul.mubr.f32.gmra.mxu0 %v1196
    %v1264 = vpop.f32.mrf.mxu0
    %v1265 = vadd.f32 0.0, %v1264
    %v1266 = vpop.f32.mrf.mxu0
    %1267 = vdwg.mxu0
    %v1268 = vld [vmem:[%s2 + $0x20] sm:$0xff]
    %v1269 = vld [vmem:[%s2 + $0x28] sm:$0xff]
    %v1271 = vsel %vm117, %v1189, 0
    %v1274 = vsel %vm117, %v1265, 0
    %1276 = vmatprep.subr.mxu0 0.0
    %1277 = vmatpush1.msra.mxu0 0.0
    %1278 = vmatprep.subr.mxu0 0.0
    %1279 = vmatpush1.msra.mxu0 0.0
    %1280 = vmatprep.subr.mxu0 0.0
    %1281 = vmatpush1.msra.mxu0 0.0
    %1282 = vmatprep.subr.mxu0 0.0
    %1283 = vmatpush1.msra.mxu0 0.0
    %1284 = vmatprep.subr.mxu0 0.0
    %1285 = vmatpush1.msra.mxu0 0.0
    %1286 = vmatprep.subr.mxu0 0.0
    %1287 = vmatpush1.msra.mxu0 0.0
    %1288 = vmatprep.subr.mxu0 0.0
    %1289 = vmatpush1.msra.mxu0 0.0
    %1290 = vmatprep.subr.mxu0 0.0
    %1291 = vmatpush1.msra.mxu0 0.0
    %1292 = vmatprep.subr.mxu0 0.0
    %1293 = vmatpush1.msra.mxu0 0.0
    %1294 = vmatprep.subr.mxu0 0.0
    %1295 = vmatpush1.msra.mxu0 0.0
    %1296 = vmatprep.subr.mxu0 0.0
    %1297 = vmatpush1.msra.mxu0 0.0
    %1298 = vmatprep.subr.mxu0 0.0
    %1299 = vmatpush1.msra.mxu0 0.0
    %1300 = vmatprep.subr.mxu0 0.0
    %1301 = vmatpush1.msra.mxu0 0.0
    %1302 = vmatprep.subr.mxu0 0.0
    %1303 = vmatpush1.msra.mxu0 0.0
    %1304 = vmatprep.subr.mxu0 0.0
    %1305 = vmatpush1.msra.mxu0 %v1269
    %1306 = vmatprep.subr.mxu0 0.0
    %1307 = vmatpush1.msra.mxu0 %v1268
    %1308 = vmatprep.subr.mxu0 0.0
    %1309 = vmatpush2.msra.mxu0 0.0
    %1310 = vmatprep.subr.mxu0 0.0
    %1311 = vmatpush2.msra.mxu0 0.0
    %1312 = vmatprep.subr.mxu0 0.0
    %1313 = vmatpush2.msra.mxu0 0.0
    %1314 = vmatprep.subr.mxu0 0.0
    %1315 = vmatpush2.msra.mxu0 0.0
    %1316 = vmatprep.subr.mxu0 0.0
    %1317 = vmatpush2.msra.mxu0 0.0
    %1318 = vmatprep.subr.mxu0 0.0
    %1319 = vmatpush2.msra.mxu0 0.0
    %1320 = vmatprep.subr.mxu0 0.0
    %1321 = vmatpush2.msra.mxu0 0.0
    %1322 = vmatprep.subr.mxu0 0.0
    %1323 = vmatpush2.msra.mxu0 0.0
    %1324 = vmatprep.subr.mxu0 0.0
    %1325 = vmatpush2.msra.mxu0 0.0
    %1326 = vmatprep.subr.mxu0 0.0
    %1327 = vmatpush2.msra.mxu0 0.0
    %1328 = vmatprep.subr.mxu0 0.0
    %1329 = vmatpush2.msra.mxu0 0.0
    %1330 = vmatprep.subr.mxu0 0.0
    %1331 = vmatpush2.msra.mxu0 0.0
    %1332 = vmatprep.subr.mxu0 0.0
    %1333 = vmatpush2.msra.mxu0 0.0
    %1334 = vmatprep.subr.mxu0 0.0
    %1335 = vmatpush2.msra.mxu0 0.0
    %1336 = vmatprep.subr.mxu0 0.0
    %1337 = vmatpush2.msra.mxu0 0.0
    %1338 = vmatprep.subr.mxu0 0.0
    %1339 = vmatpush2.msra.mxu0 0.0
    %1340 = vmatprep.mubr.f32.mxu0 0.0
    %1341 = vmatmul.mubr.f32.gmra.mxu0 %v1271
    %v1342 = vpop.f32.mrf.mxu0
    %v1343 = vadd.f32 0.0, %v1342
    %v1344 = vpop.f32.mrf.mxu0
    %1345 = vmatprep.mubr.f32.mxu0 0.0
    %1346 = vmatmul.mubr.f32.gmra.mxu0 %v1274
    %v1347 = vpop.f32.mrf.mxu0
    %v1348 = vadd.f32 0.0, %v1347
    %v1349 = vpop.f32.mrf.mxu0
    %1350 = vdwg.mxu0
    %v1351 = vadd.f32 %v930, %v1343
    %v1352 = vadd.f32 %v935, %v1348
    %1353 = vrot.lane.b32.xlu0 %v112, 80
    %v1354 = vpop.permute.xlu0 %1353
    %1355 = vrot.lane.b32.xlu0 %v102, 16
    %v1356 = vpop.permute.xlu0 %1355
    %v1357 = vsel %vm117, %v1354, 0
    %v1359 = vsel %vm117, %v1356, 0
    %1361 = vmatprep.subr.mxu0 0.0
    %1362 = vmatpush1.xpose.msra.mxu0 0.0
    %1363 = vmatprep.subr.mxu0 0.0
    %1364 = vmatpush1.xpose.msra.mxu0 0.0
    %1365 = vmatprep.subr.mxu0 0.0
    %1366 = vmatpush1.xpose.msra.mxu0 0.0
    %1367 = vmatprep.subr.mxu0 0.0
    %1368 = vmatpush1.xpose.msra.mxu0 0.0
    %1369 = vmatprep.subr.mxu0 0.0
    %1370 = vmatpush1.xpose.msra.mxu0 0.0
    %1371 = vmatprep.subr.mxu0 0.0
    %1372 = vmatpush1.xpose.msra.mxu0 0.0
    %1373 = vmatprep.subr.mxu0 0.0
    %1374 = vmatpush1.xpose.msra.mxu0 0.0
    %1375 = vmatprep.subr.mxu0 0.0
    %1376 = vmatpush1.xpose.msra.mxu0 0.0
    %1377 = vmatprep.subr.mxu0 0.0
    %1378 = vmatpush1.xpose.msra.mxu0 0.0
    %1379 = vmatprep.subr.mxu0 0.0
    %1380 = vmatpush1.xpose.msra.mxu0 0.0
    %1381 = vmatprep.subr.mxu0 0.0
    %1382 = vmatpush1.xpose.msra.mxu0 0.0
    %1383 = vmatprep.subr.mxu0 0.0
    %1384 = vmatpush1.xpose.msra.mxu0 0.0
    %1385 = vmatprep.subr.mxu0 0.0
    %1386 = vmatpush1.xpose.msra.mxu0 0.0
    %1387 = vmatprep.subr.mxu0 0.0
    %1388 = vmatpush1.xpose.msra.mxu0 0.0
    %1389 = vmatprep.subr.mxu0 0.0
    %1390 = vmatpush1.xpose.msra.mxu0 0.0
    %1391 = vmatprep.subr.mxu0 0.0
    %1392 = vmatpush1.xpose.msra.mxu0 %v1359
    %1393 = vmatprep.subr.mxu0 0.0
    %1394 = vmatpush2.xpose.msra.mxu0 0.0
    %1395 = vmatprep.subr.mxu0 0.0
    %1396 = vmatpush2.xpose.msra.mxu0 0.0
    %1397 = vmatprep.subr.mxu0 0.0
    %1398 = vmatpush2.xpose.msra.mxu0 0.0
    %1399 = vmatprep.subr.mxu0 0.0
    %1400 = vmatpush2.xpose.msra.mxu0 0.0
    %1401 = vmatprep.subr.mxu0 0.0
    %1402 = vmatpush2.xpose.msra.mxu0 0.0
    %1403 = vmatprep.subr.mxu0 0.0
    %1404 = vmatpush2.xpose.msra.mxu0 0.0
    %1405 = vmatprep.subr.mxu0 0.0
    %1406 = vmatpush2.xpose.msra.mxu0 0.0
    %1407 = vmatprep.subr.mxu0 0.0
    %1408 = vmatpush2.xpose.msra.mxu0 0.0
    %1409 = vmatprep.subr.mxu0 0.0
    %1410 = vmatpush2.xpose.msra.mxu0 0.0
    %1411 = vmatprep.subr.mxu0 0.0
    %1412 = vmatpush2.xpose.msra.mxu0 0.0
    %1413 = vmatprep.subr.mxu0 0.0
    %1414 = vmatpush2.xpose.msra.mxu0 0.0
    %1415 = vmatprep.subr.mxu0 0.0
    %1416 = vmatpush2.xpose.msra.mxu0 0.0
    %1417 = vmatprep.subr.mxu0 0.0
    %1418 = vmatpush2.xpose.msra.mxu0 0.0
    %1419 = vmatprep.subr.mxu0 0.0
    %1420 = vmatpush2.xpose.msra.mxu0 0.0
    %1421 = vmatprep.subr.mxu0 0.0
    %1422 = vmatpush2.xpose.msra.mxu0 0.0
    %1423 = vmatprep.subr.mxu0 0.0
    %1424 = vmatpush2.xpose.msra.mxu0 0.0
    %1425 = vmatprep.mubr.f32.mxu0 0.0
    %1426 = vmatmul.mubr.f32.gmra.mxu0 %v1357
    %v1427 = vpop.f32.mrf.mxu0
    %v1428 = vadd.f32 0.0, %v1427
    %v1429 = vpop.f32.mrf.mxu0
    %1430 = vdwg.mxu0
    %1431 = vrot.lane.b32.xlu0 %v113, 80
    %v1432 = vpop.permute.xlu0 %1431
    %1433 = vrot.lane.b32.xlu0 %v108, 16
    %v1434 = vpop.permute.xlu0 %1433
    %v1435 = vsel %vm117, %v1432, 0
    %v1437 = vsel %vm117, %v1434, 0
    %1439 = vmatprep.subr.mxu0 0.0
    %1440 = vmatpush1.xpose.msra.mxu0 0.0
    %1441 = vmatprep.subr.mxu0 0.0
    %1442 = vmatpush1.xpose.msra.mxu0 0.0
    %1443 = vmatprep.subr.mxu0 0.0
    %1444 = vmatpush1.xpose.msra.mxu0 0.0
    %1445 = vmatprep.subr.mxu0 0.0
    %1446 = vmatpush1.xpose.msra.mxu0 0.0
    %1447 = vmatprep.subr.mxu0 0.0
    %1448 = vmatpush1.xpose.msra.mxu0 0.0
    %1449 = vmatprep.subr.mxu0 0.0
    %1450 = vmatpush1.xpose.msra.mxu0 0.0
    %1451 = vmatprep.subr.mxu0 0.0
    %1452 = vmatpush1.xpose.msra.mxu0 0.0
    %1453 = vmatprep.subr.mxu0 0.0
    %1454 = vmatpush1.xpose.msra.mxu0 0.0
    %1455 = vmatprep.subr.mxu0 0.0
    %1456 = vmatpush1.xpose.msra.mxu0 0.0
    %1457 = vmatprep.subr.mxu0 0.0
    %1458 = vmatpush1.xpose.msra.mxu0 0.0
    %1459 = vmatprep.subr.mxu0 0.0
    %1460 = vmatpush1.xpose.msra.mxu0 0.0
    %1461 = vmatprep.subr.mxu0 0.0
    %1462 = vmatpush1.xpose.msra.mxu0 0.0
    %1463 = vmatprep.subr.mxu0 0.0
    %1464 = vmatpush1.xpose.msra.mxu0 0.0
    %1465 = vmatprep.subr.mxu0 0.0
    %1466 = vmatpush1.xpose.msra.mxu0 0.0
    %1467 = vmatprep.subr.mxu0 0.0
    %1468 = vmatpush1.xpose.msra.mxu0 0.0
    %1469 = vmatprep.subr.mxu0 0.0
    %1470 = vmatpush1.xpose.msra.mxu0 %v1437
    %1471 = vmatprep.subr.mxu0 0.0
    %1472 = vmatpush2.xpose.msra.mxu0 0.0
    %1473 = vmatprep.subr.mxu0 0.0
    %1474 = vmatpush2.xpose.msra.mxu0 0.0
    %1475 = vmatprep.subr.mxu0 0.0
    %1476 = vmatpush2.xpose.msra.mxu0 0.0
    %1477 = vmatprep.subr.mxu0 0.0
    %1478 = vmatpush2.xpose.msra.mxu0 0.0
    %1479 = vmatprep.subr.mxu0 0.0
    %1480 = vmatpush2.xpose.msra.mxu0 0.0
    %1481 = vmatprep.subr.mxu0 0.0
    %1482 = vmatpush2.xpose.msra.mxu0 0.0
    %1483 = vmatprep.subr.mxu0 0.0
    %1484 = vmatpush2.xpose.msra.mxu0 0.0
    %1485 = vmatprep.subr.mxu0 0.0
    %1486 = vmatpush2.xpose.msra.mxu0 0.0
    %1487 = vmatprep.subr.mxu0 0.0
    %1488 = vmatpush2.xpose.msra.mxu0 0.0
    %1489 = vmatprep.subr.mxu0 0.0
    %1490 = vmatpush2.xpose.msra.mxu0 0.0
    %1491 = vmatprep.subr.mxu0 0.0
    %1492 = vmatpush2.xpose.msra.mxu0 0.0
    %1493 = vmatprep.subr.mxu0 0.0
    %1494 = vmatpush2.xpose.msra.mxu0 0.0
    %1495 = vmatprep.subr.mxu0 0.0
    %1496 = vmatpush2.xpose.msra.mxu0 0.0
    %1497 = vmatprep.subr.mxu0 0.0
    %1498 = vmatpush2.xpose.msra.mxu0 0.0
    %1499 = vmatprep.subr.mxu0 0.0
    %1500 = vmatpush2.xpose.msra.mxu0 0.0
    %1501 = vmatprep.subr.mxu0 0.0
    %1502 = vmatpush2.xpose.msra.mxu0 0.0
    %1503 = vmatprep.mubr.f32.mxu0 0.0
    %1504 = vmatmul.mubr.f32.gmra.mxu0 %v1435
    %v1505 = vpop.f32.mrf.mxu0
    %v1506 = vadd.f32 0.0, %v1505
    %v1507 = vpop.f32.mrf.mxu0
    %1508 = vdwg.mxu0
    %v1509 = vsel %vm271, %v1428, -inf
    %1510 = vmax.xlane.f32.xlu0 %v1509
    %v1511 = vpop.xlane.xlu0 %1510
    %v1512 = vsel %vm271, %v1506, -inf
    %1513 = vmax.xlane.f32.xlu0 %v1512
    %v1514 = vpop.xlane.xlu0 %1513
    %v1515 = vsub.f32 %v1428, %v1511
    %v1516 = vsub.f32 %v1506, %v1514
    %v1517 = vmul.f32 %v1515, 1.442695
    %v1518 = vpow.pop %v1517
    %v1519 = vmul.f32 %v1516, 1.442695
    %v1520 = vpow.pop %v1519
    %v1521 = vsel %vm271, %v1518, 0.0
    %1522 = vadd.xlane.f32.xlu0 %v1521
    %v1523 = vpop.xlane.xlu0 %1522
    %v1524 = vsel %vm271, %v1520, 0.0
    %1525 = vadd.xlane.f32.xlu0 %v1524
    %v1526 = vpop.xlane.xlu0 %1525
    %v1527 = vrcp.pop %v1523
    %v1528 = vrcp.pop %v1526
    %v1529 = vmul.f32 %v1518, %v1527
    %v1530 = vmul.f32 %v1520, %v1528
    %1531 = vrot.lane.b32.xlu0 %v104, 80
    %v1532 = vpop.permute.xlu0 %1531
    %v1535 = vsel %vm271, %v1529, 0
    %1537 = vmatprep.subr.mxu0 0.0
    %1538 = vmatpush1.msra.mxu0 0.0
    %1539 = vmatprep.subr.mxu0 0.0
    %1540 = vmatpush1.msra.mxu0 0.0
    %1541 = vmatprep.subr.mxu0 0.0
    %1542 = vmatpush1.msra.mxu0 0.0
    %1543 = vmatprep.subr.mxu0 0.0
    %1544 = vmatpush1.msra.mxu0 0.0
    %1545 = vmatprep.subr.mxu0 0.0
    %1546 = vmatpush1.msra.mxu0 0.0
    %1547 = vmatprep.subr.mxu0 0.0
    %1548 = vmatpush1.msra.mxu0 0.0
    %1549 = vmatprep.subr.mxu0 0.0
    %1550 = vmatpush1.msra.mxu0 0.0
    %1551 = vmatprep.subr.mxu0 0.0
    %1552 = vmatpush1.msra.mxu0 0.0
    %1553 = vmatprep.subr.mxu0 0.0
    %1554 = vmatpush1.msra.mxu0 0.0
    %1555 = vmatprep.subr.mxu0 0.0
    %1556 = vmatpush1.msra.mxu0 0.0
    %1557 = vmatprep.subr.mxu0 0.0
    %1558 = vmatpush1.msra.mxu0 0.0
    %1559 = vmatprep.subr.mxu0 0.0
    %1560 = vmatpush1.msra.mxu0 0.0
    %1561 = vmatprep.subr.mxu0 0.0
    %1562 = vmatpush1.msra.mxu0 0.0
    %1563 = vmatprep.subr.mxu0 0.0
    %1564 = vmatpush1.msra.mxu0 0.0
    %1565 = vmatprep.subr.mxu0 0.0
    %1566 = vmatpush1.msra.mxu0 0.0
    %1567 = vmatprep.subr.mxu0 0.0
    %1568 = vmatpush1.msra.mxu0 %v1532
    %1569 = vmatprep.subr.mxu0 0.0
    %1570 = vmatpush2.msra.mxu0 0.0
    %1571 = vmatprep.subr.mxu0 0.0
    %1572 = vmatpush2.msra.mxu0 0.0
    %1573 = vmatprep.subr.mxu0 0.0
    %1574 = vmatpush2.msra.mxu0 0.0
    %1575 = vmatprep.subr.mxu0 0.0
    %1576 = vmatpush2.msra.mxu0 0.0
    %1577 = vmatprep.subr.mxu0 0.0
    %1578 = vmatpush2.msra.mxu0 0.0
    %1579 = vmatprep.subr.mxu0 0.0
    %1580 = vmatpush2.msra.mxu0 0.0
    %1581 = vmatprep.subr.mxu0 0.0
    %1582 = vmatpush2.msra.mxu0 0.0
    %1583 = vmatprep.subr.mxu0 0.0
    %1584 = vmatpush2.msra.mxu0 0.0
    %1585 = vmatprep.subr.mxu0 0.0
    %1586 = vmatpush2.msra.mxu0 0.0
    %1587 = vmatprep.subr.mxu0 0.0
    %1588 = vmatpush2.msra.mxu0 0.0
    %1589 = vmatprep.subr.mxu0 0.0
    %1590 = vmatpush2.msra.mxu0 0.0
    %1591 = vmatprep.subr.mxu0 0.0
    %1592 = vmatpush2.msra.mxu0 0.0
    %1593 = vmatprep.subr.mxu0 0.0
    %1594 = vmatpush2.msra.mxu0 0.0
    %1595 = vmatprep.subr.mxu0 0.0
    %1596 = vmatpush2.msra.mxu0 0.0
    %1597 = vmatprep.subr.mxu0 0.0
    %1598 = vmatpush2.msra.mxu0 0.0
    %1599 = vmatprep.subr.mxu0 0.0
    %1600 = vmatpush2.msra.mxu0 0.0
    %1601 = vmatprep.mubr.f32.mxu0 0.0
    %1602 = vmatmul.mubr.f32.gmra.mxu0 %v1535
    %v1603 = vpop.f32.mrf.mxu0
    %v1604 = vadd.f32 0.0, %v1603
    %v1605 = vpop.f32.mrf.mxu0
    %1606 = vdwg.mxu0
    %1607 = vrot.lane.b32.xlu0 %v110, 80
    %v1608 = vpop.permute.xlu0 %1607
    %v1611 = vsel %vm271, %v1530, 0
    %1613 = vmatprep.subr.mxu0 0.0
    %1614 = vmatpush1.msra.mxu0 0.0
    %1615 = vmatprep.subr.mxu0 0.0
    %1616 = vmatpush1.msra.mxu0 0.0
    %1617 = vmatprep.subr.mxu0 0.0
    %1618 = vmatpush1.msra.mxu0 0.0
    %1619 = vmatprep.subr.mxu0 0.0
    %1620 = vmatpush1.msra.mxu0 0.0
    %1621 = vmatprep.subr.mxu0 0.0
    %1622 = vmatpush1.msra.mxu0 0.0
    %1623 = vmatprep.subr.mxu0 0.0
    %1624 = vmatpush1.msra.mxu0 0.0
    %1625 = vmatprep.subr.mxu0 0.0
    %1626 = vmatpush1.msra.mxu0 0.0
    %1627 = vmatprep.subr.mxu0 0.0
    %1628 = vmatpush1.msra.mxu0 0.0
    %1629 = vmatprep.subr.mxu0 0.0
    %1630 = vmatpush1.msra.mxu0 0.0
    %1631 = vmatprep.subr.mxu0 0.0
    %1632 = vmatpush1.msra.mxu0 0.0
    %1633 = vmatprep.subr.mxu0 0.0
    %1634 = vmatpush1.msra.mxu0 0.0
    %1635 = vmatprep.subr.mxu0 0.0
    %1636 = vmatpush1.msra.mxu0 0.0
    %1637 = vmatprep.subr.mxu0 0.0
    %1638 = vmatpush1.msra.mxu0 0.0
    %1639 = vmatprep.subr.mxu0 0.0
    %1640 = vmatpush1.msra.mxu0 0.0
    %1641 = vmatprep.subr.mxu0 0.0
    %1642 = vmatpush1.msra.mxu0 0.0
    %1643 = vmatprep.subr.mxu0 0.0
    %1644 = vmatpush1.msra.mxu0 %v1608
    %1645 = vmatprep.subr.mxu0 0.0
    %1646 = vmatpush2.msra.mxu0 0.0
    %1647 = vmatprep.subr.mxu0 0.0
    %1648 = vmatpush2.msra.mxu0 0.0
    %1649 = vmatprep.subr.mxu0 0.0
    %1650 = vmatpush2.msra.mxu0 0.0
    %1651 = vmatprep.subr.mxu0 0.0
    %1652 = vmatpush2.msra.mxu0 0.0
    %1653 = vmatprep.subr.mxu0 0.0
    %1654 = vmatpush2.msra.mxu0 0.0
    %1655 = vmatprep.subr.mxu0 0.0
    %1656 = vmatpush2.msra.mxu0 0.0
    %1657 = vmatprep.subr.mxu0 0.0
    %1658 = vmatpush2.msra.mxu0 0.0
    %1659 = vmatprep.subr.mxu0 0.0
    %1660 = vmatpush2.msra.mxu0 0.0
    %1661 = vmatprep.subr.mxu0 0.0
    %1662 = vmatpush2.msra.mxu0 0.0
    %1663 = vmatprep.subr.mxu0 0.0
    %1664 = vmatpush2.msra.mxu0 0.0
    %1665 = vmatprep.subr.mxu0 0.0
    %1666 = vmatpush2.msra.mxu0 0.0
    %1667 = vmatprep.subr.mxu0 0.0
    %1668 = vmatpush2.msra.mxu0 0.0
    %1669 = vmatprep.subr.mxu0 0.0
    %1670 = vmatpush2.msra.mxu0 0.0
    %1671 = vmatprep.subr.mxu0 0.0
    %1672 = vmatpush2.msra.mxu0 0.0
    %1673 = vmatprep.subr.mxu0 0.0
    %1674 = vmatpush2.msra.mxu0 0.0
    %1675 = vmatprep.subr.mxu0 0.0
    %1676 = vmatpush2.msra.mxu0 0.0
    %1677 = vmatprep.mubr.f32.mxu0 0.0
    %1678 = vmatmul.mubr.f32.gmra.mxu0 %v1611
    %v1679 = vpop.f32.mrf.mxu0
    %v1680 = vadd.f32 0.0, %v1679
    %v1681 = vpop.f32.mrf.mxu0
    %1682 = vdwg.mxu0
    %v1683 = vld [vmem:[%s2 + $0x30] sm:$0xff]
    %v1684 = vld [vmem:[%s2 + $0x38] sm:$0xff]
    %v1686 = vsel %vm117, %v1604, 0
    %v1689 = vsel %vm117, %v1680, 0
    %1691 = vmatprep.subr.mxu0 0.0
    %1692 = vmatpush1.msra.mxu0 0.0
    %1693 = vmatprep.subr.mxu0 0.0
    %1694 = vmatpush1.msra.mxu0 0.0
    %1695 = vmatprep.subr.mxu0 0.0
    %1696 = vmatpush1.msra.mxu0 0.0
    %1697 = vmatprep.subr.mxu0 0.0
    %1698 = vmatpush1.msra.mxu0 0.0
    %1699 = vmatprep.subr.mxu0 0.0
    %1700 = vmatpush1.msra.mxu0 0.0
    %1701 = vmatprep.subr.mxu0 0.0
    %1702 = vmatpush1.msra.mxu0 0.0
    %1703 = vmatprep.subr.mxu0 0.0
    %1704 = vmatpush1.msra.mxu0 0.0
    %1705 = vmatprep.subr.mxu0 0.0
    %1706 = vmatpush1.msra.mxu0 0.0
    %1707 = vmatprep.subr.mxu0 0.0
    %1708 = vmatpush1.msra.mxu0 0.0
    %1709 = vmatprep.subr.mxu0 0.0
    %1710 = vmatpush1.msra.mxu0 0.0
    %1711 = vmatprep.subr.mxu0 0.0
    %1712 = vmatpush1.msra.mxu0 0.0
    %1713 = vmatprep.subr.mxu0 0.0
    %1714 = vmatpush1.msra.mxu0 0.0
    %1715 = vmatprep.subr.mxu0 0.0
    %1716 = vmatpush1.msra.mxu0 0.0
    %1717 = vmatprep.subr.mxu0 0.0
    %1718 = vmatpush1.msra.mxu0 0.0
    %1719 = vmatprep.subr.mxu0 0.0
    %1720 = vmatpush1.msra.mxu0 %v1684
    %1721 = vmatprep.subr.mxu0 0.0
    %1722 = vmatpush1.msra.mxu0 %v1683
    %1723 = vmatprep.subr.mxu0 0.0
    %1724 = vmatpush2.msra.mxu0 0.0
    %1725 = vmatprep.subr.mxu0 0.0
    %1726 = vmatpush2.msra.mxu0 0.0
    %1727 = vmatprep.subr.mxu0 0.0
    %1728 = vmatpush2.msra.mxu0 0.0
    %1729 = vmatprep.subr.mxu0 0.0
    %1730 = vmatpush2.msra.mxu0 0.0
    %1731 = vmatprep.subr.mxu0 0.0
    %1732 = vmatpush2.msra.mxu0 0.0
    %1733 = vmatprep.subr.mxu0 0.0
    %1734 = vmatpush2.msra.mxu0 0.0
    %1735 = vmatprep.subr.mxu0 0.0
    %1736 = vmatpush2.msra.mxu0 0.0
    %1737 = vmatprep.subr.mxu0 0.0
    %1738 = vmatpush2.msra.mxu0 0.0
    %1739 = vmatprep.subr.mxu0 0.0
    %1740 = vmatpush2.msra.mxu0 0.0
    %1741 = vmatprep.subr.mxu0 0.0
    %1742 = vmatpush2.msra.mxu0 0.0
    %1743 = vmatprep.subr.mxu0 0.0
    %1744 = vmatpush2.msra.mxu0 0.0
    %1745 = vmatprep.subr.mxu0 0.0
    %1746 = vmatpush2.msra.mxu0 0.0
    %1747 = vmatprep.subr.mxu0 0.0
    %1748 = vmatpush2.msra.mxu0 0.0
    %1749 = vmatprep.subr.mxu0 0.0
    %1750 = vmatpush2.msra.mxu0 0.0
    %1751 = vmatprep.subr.mxu0 0.0
    %1752 = vmatpush2.msra.mxu0 0.0
    %1753 = vmatprep.subr.mxu0 0.0
    %1754 = vmatpush2.msra.mxu0 0.0
    %1755 = vmatprep.mubr.f32.mxu0 0.0
    %1756 = vmatmul.mubr.f32.gmra.mxu0 %v1686
    %v1757 = vpop.f32.mrf.mxu0
    %v1758 = vadd.f32 0.0, %v1757
    %v1759 = vpop.f32.mrf.mxu0
    %1760 = vmatprep.mubr.f32.mxu0 0.0
    %1761 = vmatmul.mubr.f32.gmra.mxu0 %v1689
    %v1762 = vpop.f32.mrf.mxu0
    %v1763 = vadd.f32 0.0, %v1762
    %v1764 = vpop.f32.mrf.mxu0
    %1765 = vdwg.mxu0
    %v1766 = vadd.f32 %v1351, %v1758
    %v1767 = vadd.f32 %v1352, %v1763
    %v1768 = vld [vmem:[%s3] sm:$0x1]
    %v1770 = vlaneseq
    %v1771 = vshrl.u32 %v1770, 7
    %v1772 = vsub.s32 0, %v1771
    %v1773 = vrot.slane %v1768, %v1772
    %v1775 = vadd.f32 %v1766, %v1773
    %v1776 = vadd.f32 %v1767, %v1773
    %1777 = vst.msk [vmem:[#allocation2] sm:$0xff] %vm28, %v1775
    %1778 = vst.msk [vmem:[#allocation2 + $0x8] sm:$0xff] %vm28, %v1776
    // Predicated region
    $region18: #{tpu_custom_call.1} parent=1 // pred_check
      _
    $region19: #{tpu_custom_call.1} parent=1 // pred_check_branch
      %1780 = sbr.rel (0) target = $region21
    $region20: #{tpu_custom_call.1} parent=1 // pred_region
      %s1782 = ssub.s32 256, 256
      %1783 = vsyncadd [#allocation3], %s1782
      %s1784 = sshll.u32 [#allocation2], 4
      %s1785 = int_to_ptr.vmem [resolvable:$true] %s1784
      %1790 = dma.vmem_to_hbm [thread:$0]  %s1785, 256, %s4, [#allocation3], 128, 128, 8
    $region21: #{tpu_custom_call.1} parent=1 // pred_fallthru
      _
    // Predicated region
    $region22: #{tpu_custom_call.1} parent=1 // pred_check
      _
    $region23: #{tpu_custom_call.1} parent=1 // pred_check_branch
      %1792 = sbr.rel (0) target = $region25
    $region24: #{tpu_custom_call.1} parent=1 // pred_region
      %1793 = dma.done [#allocation3], 256
    $region25: #{tpu_custom_call.1} parent=1 // pred_fallthru
      _
    %1794 = vsyncpa [#allocation3], 1

</llo_original>
